<compile_context>
chip_gen: v7x
topology: tpu7x:2x2x1
jax: 0.10.0
libtpu: 0.0.40
codegen_flags: <defaults>
</compile_context>

<pallas_src>
import functools
from math import floor

import jax
import jax.numpy as jnp
from jax.experimental import pallas as pl
from jax.experimental.pallas import tpu as pltpu

# Set to jnp.bfloat16 on v6e/v7x for full-rate MXU (accumulation stays f32 via
# preferred_element_type).  f32 keeps exact parity with the PyTorch reference.
MATMUL_DTYPE = jnp.float32


# ---------------------------------------------------------------------------
# Fused kernel
# ---------------------------------------------------------------------------
def _slice_len(x, start, length, step):
    """Static slice of `length` output positions along the L axis of [B,L,C]."""
    if step == 1:
        return x[:, start:start + length, :]
    stop = start + (length - 1) * step + 1
    return x[:, start:stop:step, :]


def _fused_cnn_kernel(*refs, n_conv, n_fc, conv_meta, pooling):
    x_ref = refs[0]
    conv_w = refs[1:1 + n_conv]                       # each [K*Cin, Cout]
    conv_b = refs[1 + n_conv:1 + 2 * n_conv]          # each [1, Cout]
    fc_w = refs[1 + 2 * n_conv:1 + 2 * n_conv + n_fc] # fc_w[0]: [L, C, F1]
    fc_b = refs[1 + 2 * n_conv + n_fc:1 + 2 * n_conv + 2 * n_fc]
    o_ref = refs[-1]                                  # [Bb, 1, F_out]

    x = x_ref[...]                                    # [Bb, L, Cin]

    # ---------------- conv blocks: Conv1d + bias + ReLU (+ MaxPool1d) -------
    for li in range(n_conv):
        K, stride, dil, l_conv, l_out = conv_meta[li]
        w = conv_w[li][...]                           # [K*Cin, Cout]
        b = conv_b[li][...]                           # [1, Cout]
        Bb, _, Cin = x.shape
        Cout = w.shape[-1]

        # im2col: one matmul with contraction dim K*Cin.
        cols = [_slice_len(x, k * dil, l_conv, stride) for k in range(K)]
        patches = jnp.concatenate(cols, axis=-1)      # [Bb, l_conv, K*Cin]
        y2d = jnp.dot(
            patches.reshape(Bb * l_conv, K * Cin).astype(MATMUL_DTYPE),
            w.astype(MATMUL_DTYPE),
            preferred_element_type=jnp.float32)       # [Bb*l_conv, Cout]
        y2d = jnp.maximum(y2d + b, 0.0)               # bias + ReLU; Dropout=id
        y = y2d.reshape(Bb, l_conv, Cout)

        if pooling:
            # nn.MaxPool1d(kernel_size=K, stride=stride, dilation=dil)
            pooled = _slice_len(y, 0, l_out, stride)
            for k in range(1, K):
                pooled = jnp.maximum(pooled,
                                     _slice_len(y, k * dil, l_out, stride))
            y = pooled
        x = y                                         # [Bb, l_out, Cout]

    # ---------------- flatten + FC layers ------------------------------------
    # PyTorch flattens NCL -> [B, C*L].  FC1's weight was permuted at build
    # time to [L, C, F1], so a batched einsum over L + a sum implements the
    # flatten with no in-kernel transpose or lane-merging reshape.
    w1 = fc_w[0][...]                                 # [L_last, C_last, F1]
    t = jnp.einsum('blc,lcf->lbf',
                   x.astype(MATMUL_DTYPE), w1.astype(MATMUL_DTYPE),
                   preferred_element_type=jnp.float32)  # [L_last, Bb, F1]
    h = t.sum(axis=0) + fc_b[0][...]                  # [Bb, F1]
    if n_fc > 1:
        h = jnp.maximum(h, 0.0)                       # ReLU; FC Dropout = id

    for fi in range(1, n_fc):
        w = fc_w[fi][...]
        b = fc_b[fi][...]
        h = jnp.dot(h.astype(MATMUL_DTYPE), w.astype(MATMUL_DTYPE),
                    preferred_element_type=jnp.float32) + b
        if fi < n_fc - 1:
            h = jnp.maximum(h, 0.0)

    o_ref[...] = h.reshape(o_ref.shape).astype(o_ref.dtype)


# ---------------------------------------------------------------------------
# Wrapper: one pallas_call, grid over batch (parallel for v7x megacore)
# ---------------------------------------------------------------------------
def _full_spec(a):
    zeros = (0,) * a.ndim
    return pl.BlockSpec(a.shape, lambda i, _z=zeros: _z)


def cnn_forward(params, batch):
    x = batch["X"]                                    # [B, seq_len, n_features]
    B, L, Cin = x.shape
    conv_w, conv_b = params["conv_w"], params["conv_b"]
    fc_w, fc_b = params["fc_w"], params["fc_b"]
    conv_meta, pooling = params["conv_meta"], params["pooling"]
    n_conv, n_fc = len(conv_w), len(fc_w)
    f_out = fc_w[-1].shape[-1]

    kernel = functools.partial(_fused_cnn_kernel, n_conv=n_conv, n_fc=n_fc,
                               conv_meta=conv_meta, pooling=pooling)

    in_specs = ([pl.BlockSpec((1, L, Cin), lambda i: (i, 0, 0))]
                + [_full_spec(w) for w in conv_w]
                + [_full_spec(b) for b in conv_b]
                + [_full_spec(w) for w in fc_w]
                + [_full_spec(b) for b in fc_b])

    out = pl.pallas_call(
        kernel,
        grid=(B,),
        out_shape=jax.ShapeDtypeStruct((B, 1, f_out), jnp.float32),
        in_specs=in_specs,
        out_specs=pl.BlockSpec((1, 1, f_out), lambda i: (i, 0, 0)),
        compiler_params=pltpu.CompilerParams(
            dimension_semantics=("parallel",)),   # v7x: shard batch over 2 TCs
    )(x, *conv_w, *conv_b, *fc_w, *fc_b)
    return out.reshape(B, f_out)


# ---------------------------------------------------------------------------
# Config + deterministic parameter init
# ---------------------------------------------------------------------------
CONFIG = {
    "train": {"batch_size": 2, "n_features": 4, "seq_len": 16},
    "model": {
        "cnn": {
            "activation": "ReLU",
            "normalization_layer": None,       # no norm layers
            "pooling": True,
            "out_features": [8, 16],
            "pooling_sizes": [2],               # present but unused by the
                                                # PyTorch module's MaxPool1d
            "kernel_sizes": [3],
            "strides": [1],
            "dilations": [1],
            "dropout_rates": [0.0],
            "fc_outputs": [32, 10],
            "fc_dropout_rates": [0.0, 0.0],
        }
    },
}


def build_params(config, key):
    mc = config["model"]["cnn"]
    n_features = config["train"]["n_features"]
    seq_len = config["train"]["seq_len"]
    out_features = mc["out_features"]
    n_conv = len(out_features)

    rep = lambda lst: lst if len(lst) == n_conv else lst * n_conv
    kernel_sizes = rep(mc["kernel_sizes"])
    strides = rep(mc["strides"])
    dilations = rep(mc["dilations"])
    pooling = mc["pooling"]

    conv_w, conv_b, conv_meta = [], [], []
    in_feature = n_features
    for out_feature, K, s, d in zip(out_features, kernel_sizes, strides,
                                    dilations):
        key, kw, kb = jax.random.split(key, 3)
        # Conv1d weight stored directly in im2col layout [K*Cin, Cout]
        # (row k*Cin+ci corresponds to PyTorch w[co, ci, k]).
        w = 0.1 * jax.random.normal(kw, (K, in_feature, out_feature),
                                    jnp.float32)
        b = 0.1 * jax.random.normal(kb, (out_feature,), jnp.float32)
        conv_w.append(w.reshape(K * in_feature, out_feature))
        conv_b.append(b.reshape(1, out_feature))

        l_conv = floor((seq_len - d * (K - 1) - 1) / s + 1)
        l_out = floor((l_conv - d * (K - 1) - 1) / s + 1) if pooling else l_conv
        conv_meta.append((K, s, d, l_conv, l_out))
        seq_len = l_out
        in_feature = out_feature

    # FC stack.  FC1 consumes PyTorch's channel-major flatten [B, C*L]; its
    # weight is permuted ONCE here to [L, C, F] so the kernel needs no
    # transpose (the flatten is folded into the weight layout).
    fc_w, fc_b = [], []
    C_last, L_last = out_features[-1], seq_len
    fc_input = C_last * L_last
    for idx, fc_output in enumerate(mc["fc_outputs"]):
        key, kw, kb = jax.random.split(key, 3)
        w = 0.1 * jax.random.normal(kw, (fc_input, fc_output), jnp.float32)
        b = 0.1 * jax.random.normal(kb, (fc_output,), jnp.float32)
        if idx == 0 and n_conv > 0:
            # rows ordered (c, l) in PyTorch layout -> [L, C, F]
            w = w.reshape(C_last, L_last, fc_output).transpose(1, 0, 2)
        fc_w.append(w)
        fc_b.append(b.reshape(1, fc_output))
        fc_input = fc_output

    return {"conv_w": conv_w, "conv_b": conv_b, "conv_meta": tuple(conv_meta),
            "fc_w": fc_w, "fc_b": fc_b, "pooling": pooling}


if __name__ == "__main__":
    key = jax.random.PRNGKey(0)
    key, kx = jax.random.split(key)
    B = CONFIG["train"]["batch_size"]
    L = CONFIG["train"]["seq_len"]
    C = CONFIG["train"]["n_features"]
    batch = {"X": jax.random.normal(kx, (B, L, C), jnp.float32)}

    params = build_params(CONFIG, key)
    out = cnn_forward(params, batch)
    out = jax.block_until_ready(out)
    assert out.shape == (B, CONFIG["model"]["cnn"]["fc_outputs"][-1])
    print("KERNEL_OK")
</pallas_src>

<mosaic_0001>
module attributes {stable_mosaic.version = 11 : i64} {
  func.func @_fused_cnn_kernel(%arg0: i32, %arg1: memref<1x16x4xf32, #tpu.memory_space<vmem>>, %arg2: memref<12x8xf32, #tpu.memory_space<vmem>>, %arg3: memref<24x16xf32, #tpu.memory_space<vmem>>, %arg4: memref<1x8xf32, #tpu.memory_space<vmem>>, %arg5: memref<1x16xf32, #tpu.memory_space<vmem>>, %arg6: memref<8x16x32xf32, #tpu.memory_space<vmem>>, %arg7: memref<32x10xf32, #tpu.memory_space<vmem>>, %arg8: memref<1x32xf32, #tpu.memory_space<vmem>>, %arg9: memref<1x10xf32, #tpu.memory_space<vmem>>, %arg10: memref<1x1x10xf32, #tpu.memory_space<vmem>>) attributes {dimension_semantics = [#tpu.dimension_semantics<parallel>], iteration_bounds = array<i64: 2>, scalar_prefetch = 0 : i64, scratch_operands = 0 : i64, tpu.core_type = #tpu.core_type<tc>, window_params = [{transform_indices = @transform_0, window_bounds = array<i64: 1, 16, 4>}, {pipeline_mode = #tpu.pipeline_mode<synchronous>, transform_indices = @transform_1, window_bounds = array<i64: 12, 8>}, {pipeline_mode = #tpu.pipeline_mode<synchronous>, transform_indices = @transform_2, window_bounds = array<i64: 24, 16>}, {pipeline_mode = #tpu.pipeline_mode<synchronous>, transform_indices = @transform_3, window_bounds = array<i64: 1, 8>}, {pipeline_mode = #tpu.pipeline_mode<synchronous>, transform_indices = @transform_4, window_bounds = array<i64: 1, 16>}, {pipeline_mode = #tpu.pipeline_mode<synchronous>, transform_indices = @transform_5, window_bounds = array<i64: 8, 16, 32>}, {pipeline_mode = #tpu.pipeline_mode<synchronous>, transform_indices = @transform_6, window_bounds = array<i64: 32, 10>}, {pipeline_mode = #tpu.pipeline_mode<synchronous>, transform_indices = @transform_7, window_bounds = array<i64: 1, 32>}, {pipeline_mode = #tpu.pipeline_mode<synchronous>, transform_indices = @transform_8, window_bounds = array<i64: 1, 10>}, {transform_indices = @transform_9, window_bounds = array<i64: 1, 1, 10>}]} {
    %c0 = arith.constant 0 : index
    %c0_0 = arith.constant 0 : index
    %c0_1 = arith.constant 0 : index
    %0 = vector.load %arg1[%c0, %c0_0, %c0_1] : memref<1x16x4xf32, #tpu.memory_space<vmem>>, vector<1x16x4xf32>
    %c0_2 = arith.constant 0 : index
    %c0_3 = arith.constant 0 : index
    %1 = vector.load %arg2[%c0_2, %c0_3] : memref<12x8xf32, #tpu.memory_space<vmem>>, vector<12x8xf32>
    %c0_4 = arith.constant 0 : index
    %c0_5 = arith.constant 0 : index
    %2 = vector.load %arg4[%c0_4, %c0_5] : memref<1x8xf32, #tpu.memory_space<vmem>>, vector<1x8xf32>
    %3 = vector.extract_strided_slice %0 {offsets = [0, 0, 0], sizes = [1, 14, 4], strides = [1, 1, 1]} : vector<1x16x4xf32> to vector<1x14x4xf32>
    %4 = vector.extract_strided_slice %0 {offsets = [0, 1, 0], sizes = [1, 14, 4], strides = [1, 1, 1]} : vector<1x16x4xf32> to vector<1x14x4xf32>
    %5 = vector.extract_strided_slice %0 {offsets = [0, 2, 0], sizes = [1, 14, 4], strides = [1, 1, 1]} : vector<1x16x4xf32> to vector<1x14x4xf32>
    %6 = tpu.concatenate %3, %4, %5 in 2 : vector<1x14x4xf32>, vector<1x14x4xf32>, vector<1x14x4xf32> -> vector<1x14x12xf32>
    %7 = vector.shape_cast %6 : vector<1x14x12xf32> to vector<14x12xf32>
    %cst = arith.constant dense<0.000000e+00> : vector<14x8xf32>
    %8 = tpu.matmul %7, %1, %cst {dimension_numbers = #tpu.dot_dimension_numbers<[1], [0], [0], [1], [0, 0, 1, 1], [], []>} : vector<14x12xf32>, vector<12x8xf32>, vector<14x8xf32> -> vector<14x8xf32>
    %9 = vector.broadcast %2 : vector<1x8xf32> to vector<14x8xf32>
    %10 = arith.addf %8, %9 : vector<14x8xf32>
    %cst_6 = arith.constant 0.000000e+00 : f32
    %11 = vector.broadcast %cst_6 : f32 to vector<14x8xf32>
    %12 = arith.maximumf %10, %11 : vector<14x8xf32>
    %13 = vector.shape_cast %12 : vector<14x8xf32> to vector<1x14x8xf32>
    %14 = vector.extract_strided_slice %13 {offsets = [0, 0, 0], sizes = [1, 12, 8], strides = [1, 1, 1]} : vector<1x14x8xf32> to vector<1x12x8xf32>
    %15 = vector.extract_strided_slice %13 {offsets = [0, 1, 0], sizes = [1, 12, 8], strides = [1, 1, 1]} : vector<1x14x8xf32> to vector<1x12x8xf32>
    %16 = arith.maximumf %14, %15 : vector<1x12x8xf32>
    %17 = vector.extract_strided_slice %13 {offsets = [0, 2, 0], sizes = [1, 12, 8], strides = [1, 1, 1]} : vector<1x14x8xf32> to vector<1x12x8xf32>
    %18 = arith.maximumf %16, %17 : vector<1x12x8xf32>
    %c0_7 = arith.constant 0 : index
    %c0_8 = arith.constant 0 : index
    %19 = vector.load %arg3[%c0_7, %c0_8] : memref<24x16xf32, #tpu.memory_space<vmem>>, vector<24x16xf32>
    %c0_9 = arith.constant 0 : index
    %c0_10 = arith.constant 0 : index
    %20 = vector.load %arg5[%c0_9, %c0_10] : memref<1x16xf32, #tpu.memory_space<vmem>>, vector<1x16xf32>
    %21 = vector.extract_strided_slice %18 {offsets = [0, 0, 0], sizes = [1, 10, 8], strides = [1, 1, 1]} : vector<1x12x8xf32> to vector<1x10x8xf32>
    %22 = vector.extract_strided_slice %18 {offsets = [0, 1, 0], sizes = [1, 10, 8], strides = [1, 1, 1]} : vector<1x12x8xf32> to vector<1x10x8xf32>
    %23 = vector.extract_strided_slice %18 {offsets = [0, 2, 0], sizes = [1, 10, 8], strides = [1, 1, 1]} : vector<1x12x8xf32> to vector<1x10x8xf32>
    %24 = tpu.concatenate %21, %22, %23 in 2 : vector<1x10x8xf32>, vector<1x10x8xf32>, vector<1x10x8xf32> -> vector<1x10x24xf32>
    %25 = vector.shape_cast %24 : vector<1x10x24xf32> to vector<10x24xf32>
    %cst_11 = arith.constant dense<0.000000e+00> : vector<10x16xf32>
    %26 = tpu.matmul %25, %19, %cst_11 {dimension_numbers = #tpu.dot_dimension_numbers<[1], [0], [0], [1], [0, 0, 1, 1], [], []>} : vector<10x24xf32>, vector<24x16xf32>, vector<10x16xf32> -> vector<10x16xf32>
    %27 = vector.broadcast %20 : vector<1x16xf32> to vector<10x16xf32>
    %28 = arith.addf %26, %27 : vector<10x16xf32>
    %cst_12 = arith.constant 0.000000e+00 : f32
    %29 = vector.broadcast %cst_12 : f32 to vector<10x16xf32>
    %30 = arith.maximumf %28, %29 : vector<10x16xf32>
    %31 = vector.shape_cast %30 : vector<10x16xf32> to vector<1x10x16xf32>
    %32 = vector.extract_strided_slice %31 {offsets = [0, 0, 0], sizes = [1, 8, 16], strides = [1, 1, 1]} : vector<1x10x16xf32> to vector<1x8x16xf32>
    %33 = vector.extract_strided_slice %31 {offsets = [0, 1, 0], sizes = [1, 8, 16], strides = [1, 1, 1]} : vector<1x10x16xf32> to vector<1x8x16xf32>
    %34 = arith.maximumf %32, %33 : vector<1x8x16xf32>
    %35 = vector.extract_strided_slice %31 {offsets = [0, 2, 0], sizes = [1, 8, 16], strides = [1, 1, 1]} : vector<1x10x16xf32> to vector<1x8x16xf32>
    %36 = arith.maximumf %34, %35 : vector<1x8x16xf32>
    %c0_13 = arith.constant 0 : index
    %c0_14 = arith.constant 0 : index
    %c0_15 = arith.constant 0 : index
    %37 = vector.load %arg6[%c0_13, %c0_14, %c0_15] : memref<8x16x32xf32, #tpu.memory_space<vmem>>, vector<8x16x32xf32>
    "tpu.trace_start"() <{level = 10 : i32, message = "blc,lcf->lbf"}> : () -> ()
    %cst_16 = arith.constant dense<0.000000e+00> : vector<8x1x32xf32>
    %38 = tpu.matmul %36, %37, %cst_16 {dimension_numbers = #tpu.dot_dimension_numbers<[2], [1], [0], [2], [0, 1, 0, 0, 1, 2], [1], [0]>} : vector<1x8x16xf32>, vector<8x16x32xf32>, vector<8x1x32xf32> -> vector<8x1x32xf32>
    "tpu.trace_stop"() : () -> ()
    %cst_17 = arith.constant dense<0.000000e+00> : vector<1x32xf32>
    %39 = vector.multi_reduction <add>, %38, %cst_17 [0] : vector<8x1x32xf32> to vector<1x32xf32>
    %c0_18 = arith.constant 0 : index
    %c0_19 = arith.constant 0 : index
    %40 = vector.load %arg8[%c0_18, %c0_19] : memref<1x32xf32, #tpu.memory_space<vmem>>, vector<1x32xf32>
    %41 = arith.addf %39, %40 : vector<1x32xf32>
    %cst_20 = arith.constant 0.000000e+00 : f32
    %42 = vector.broadcast %cst_20 : f32 to vector<1x32xf32>
    %43 = arith.maximumf %41, %42 : vector<1x32xf32>
    %c0_21 = arith.constant 0 : index
    %c0_22 = arith.constant 0 : index
    %44 = vector.load %arg7[%c0_21, %c0_22] : memref<32x10xf32, #tpu.memory_space<vmem>>, vector<32x10xf32>
    %c0_23 = arith.constant 0 : index
    %c0_24 = arith.constant 0 : index
    %45 = vector.load %arg9[%c0_23, %c0_24] : memref<1x10xf32, #tpu.memory_space<vmem>>, vector<1x10xf32>
    %cst_25 = arith.constant dense<0.000000e+00> : vector<1x10xf32>
    %46 = tpu.matmul %43, %44, %cst_25 {dimension_numbers = #tpu.dot_dimension_numbers<[1], [0], [0], [1], [0, 0, 1, 1], [], []>} : vector<1x32xf32>, vector<32x10xf32>, vector<1x10xf32> -> vector<1x10xf32>
    %47 = arith.addf %46, %45 : vector<1x10xf32>
    %48 = vector.shape_cast %47 : vector<1x10xf32> to vector<1x1x10xf32>
    %c0_26 = arith.constant 0 : index
    %c0_27 = arith.constant 0 : index
    %c0_28 = arith.constant 0 : index
    %49 = vector.load %arg10[%c0_26, %c0_27, %c0_28] : memref<1x1x10xf32, #tpu.memory_space<vmem>>, vector<1x1x10xf32>
    tpu.vector_store %arg10[%c0_26, %c0_27, %c0_28], %48 {strides = array<i32>} : memref<1x1x10xf32, #tpu.memory_space<vmem>>, vector<1x1x10xf32>,
    return
  }
  func.func @transform_0(%arg0: i32) -> (i32, i32, i32) {
    %c0_i32 = arith.constant 0 : i32
    %c0_i32_0 = arith.constant 0 : i32
    %c0_i32_1 = arith.constant 0 : i32
    return %arg0, %c0_i32, %c0_i32_0 : i32, i32, i32
  }
  func.func @transform_1(%arg0: i32) -> (i32, i32) {
    %c0_i32 = arith.constant 0 : i32
    %c0_i32_0 = arith.constant 0 : i32
    %c0_i32_1 = arith.constant 0 : i32
    return %c0_i32, %c0_i32_0 : i32, i32
  }
  func.func @transform_2(%arg0: i32) -> (i32, i32) {
    %c0_i32 = arith.constant 0 : i32
    %c0_i32_0 = arith.constant 0 : i32
    %c0_i32_1 = arith.constant 0 : i32
    return %c0_i32, %c0_i32_0 : i32, i32
  }
  func.func @transform_3(%arg0: i32) -> (i32, i32) {
    %c0_i32 = arith.constant 0 : i32
    %c0_i32_0 = arith.constant 0 : i32
    %c0_i32_1 = arith.constant 0 : i32
    return %c0_i32, %c0_i32_0 : i32, i32
  }
  func.func @transform_4(%arg0: i32) -> (i32, i32) {
    %c0_i32 = arith.constant 0 : i32
    %c0_i32_0 = arith.constant 0 : i32
    %c0_i32_1 = arith.constant 0 : i32
    return %c0_i32, %c0_i32_0 : i32, i32
  }
  func.func @transform_5(%arg0: i32) -> (i32, i32, i32) {
    %c0_i32 = arith.constant 0 : i32
    %c0_i32_0 = arith.constant 0 : i32
    %c0_i32_1 = arith.constant 0 : i32
    %c0_i32_2 = arith.constant 0 : i32
    return %c0_i32, %c0_i32_0, %c0_i32_1 : i32, i32, i32
  }
  func.func @transform_6(%arg0: i32) -> (i32, i32) {
    %c0_i32 = arith.constant 0 : i32
    %c0_i32_0 = arith.constant 0 : i32
    %c0_i32_1 = arith.constant 0 : i32
    return %c0_i32, %c0_i32_0 : i32, i32
  }
  func.func @transform_7(%arg0: i32) -> (i32, i32) {
    %c0_i32 = arith.constant 0 : i32
    %c0_i32_0 = arith.constant 0 : i32
    %c0_i32_1 = arith.constant 0 : i32
    return %c0_i32, %c0_i32_0 : i32, i32
  }
  func.func @transform_8(%arg0: i32) -> (i32, i32) {
    %c0_i32 = arith.constant 0 : i32
    %c0_i32_0 = arith.constant 0 : i32
    %c0_i32_1 = arith.constant 0 : i32
    return %c0_i32, %c0_i32_0 : i32, i32
  }
  func.func @transform_9(%arg0: i32) -> (i32, i32, i32) {
    %c0_i32 = arith.constant 0 : i32
    %c0_i32_0 = arith.constant 0 : i32
    %c0_i32_1 = arith.constant 0 : i32
    return %arg0, %c0_i32, %c0_i32_0 : i32, i32, i32
  }
}

</mosaic_0001>

<llo_original>
// kernel: tpu_custom_call.1
$region0: #{tpu_custom_call.1}
  #allocation0 [shape = 'u32[]', space=smem, size = 0x4, offset = 0x4, fixed_abs, tag = 'smem constant byte address 0x4 - core index']
  #allocation1 [shape = 'u32[144,128]{1,0:T(1,128)}', space=vmem, size = 0x12000, scoped, tag = 'internal scratch']
  %s0 = inlined_call_operand.vmem [shape: f32[2,16,4], index: 0, kind: input, shape index: {}]
  %s1 = inlined_call_operand.vmem [shape: f32[12,8], index: 1, kind: input, shape index: {}]
  %s2 = inlined_call_operand.vmem [shape: f32[24,16], index: 2, kind: input, shape index: {}]
  %s3 = inlined_call_operand.vmem [shape: f32[1,8], index: 3, kind: input, shape index: {}]
  %s4 = inlined_call_operand.vmem [shape: f32[1,16], index: 4, kind: input, shape index: {}]
  %s5 = inlined_call_operand.vmem [shape: f32[8,16,32], index: 5, kind: input, shape index: {}]
  %s6 = inlined_call_operand.vmem [shape: f32[32,10], index: 6, kind: input, shape index: {}]
  %s7 = inlined_call_operand.vmem [shape: f32[1,32], index: 7, kind: input, shape index: {}]
  %s8 = inlined_call_operand.vmem [shape: f32[1,10], index: 8, kind: input, shape index: {}]
  %s9 = inlined_call_operand.hbm [shape: f32[2,1,10], index: 9, kind: output, shape index: {}]
  %s10 = sld [smem:[#allocation0]]
  $region69: #{tpu_custom_call.1} parent=0
    _
  %s12 = ssub.s32 1, %s10
  %s13 = scalar_select 0, %s12, %s10
  $region1: #{tpu_custom_call.1} parent=0
    #allocation2 [shape = 'u8[1024]{0}', space=vmem, size = 0x400, scoped, tag = 'output window, operand 0']
    #allocation3 [shape = 's32[2]{0}', space=sflag, size = 0x8, scoped, tag = 'scoped memory for tpu_custom_call.1']
    %14 = vsyncpa [#allocation3], 0
    %s15 = scalar_lea.sflag [#allocation3], 1
    %16 = vsyncpa %s15, 0
    loop: start=0, step=1, limit=4
    $region2: #{tpu_custom_call.1} parent=1 // loop_pre_header
      _
    $region3: #{tpu_custom_call.1} parent=1 // loop_header
      %s18 = sphi 0, %s22
      %p19 = scmp.ge.s32.totalorder %s18, 4
      %s28 = sphi 0, %s30
      %s31 = sphi 0, %s28
      %s32 = sphi 0, %s31
      %s48 = sphi 0, %s32
      %s52 = sphi 0, %s52
      %s54 = sphi 0, %s52
      %s55 = sphi 0, %s54
      %s69 = sphi 0, %s55
      %s73 = sphi 0, %s73
      %s75 = sphi 0, %s73
      %s76 = sphi 0, %s75
      %s90 = sphi 0, %s76
      %s94 = sphi 0, %s94
      %s96 = sphi 0, %s94
      %s97 = sphi 0, %s96
      %s111 = sphi 0, %s97
      %s115 = sphi 0, %s115
      %s117 = sphi 0, %s115
      %s118 = sphi 0, %s117
      %s132 = sphi 0, %s118
      %s136 = sphi 0, %s136
      %s138 = sphi 0, %s136
      %s139 = sphi 0, %s138
      %s153 = sphi 0, %s139
      %s157 = sphi 0, %s157
      %s159 = sphi 0, %s157
      %s160 = sphi 0, %s159
      %s174 = sphi 0, %s160
      %s178 = sphi 0, %s178
      %s180 = sphi 0, %s178
      %s181 = sphi 0, %s180
      %s195 = sphi 0, %s181
      %s199 = sphi 0, %s199
      %s201 = sphi 0, %s199
      %s202 = sphi 0, %s201
      %s216 = sphi 0, %s202
      %s222 = sphi 0, %s224
      %s225 = sphi 0, %s222
      %s226 = sphi 0, %s225
      %s242 = sphi 0, %s226
    $region4: #{tpu_custom_call.1} parent=1 // loop_header_branch
      %21 = sbr.rel (%p19) target = $region8
    $region5: #{tpu_custom_call.1} parent=1 // loop_body
      %s23 = ssub.s32 %s18, 1
      %s24 = ssub.s32 %s18, 2
      %s25 = sadd.s32 %s18, 1
      %s26 = ssub.s32 %s18, %s25
      %p27 = scmp.eq.s32.totalorder %s26, 0
      %s29 = sadd.s32 %s28, 1
      %s30 = scalar_select %p27, %s28, %s29
      %p33 = pneg %p27
      %p34 = scmp.eq.s32.totalorder %s18, 1
      %p35 = por %p33, %p34
      %p36 = scmp.ne.s32.totalorder %s28, %s31
      %p37 = scmp.eq.s32.totalorder %s18, 0
      %p38 = por %p36, %p37
      %p39 = scmp.ne.s32.totalorder %s28, %s31
      %p40 = scmp.eq.s32.totalorder %s23, 1
      %p41 = por %p39, %p40
      %p42 = scmp.ne.s32.totalorder %s31, %s32
      %p43 = scmp.eq.s32.totalorder %s23, 0
      %p44 = por %p42, %p43
      %p45 = scmp.ne.s32.totalorder %s31, %s32
      %p46 = scmp.eq.s32.totalorder %s24, 1
      %p47 = por %p45, %p46
      %p49 = scmp.ne.s32.totalorder %s32, %s48
      %p50 = scmp.eq.s32.totalorder %s24, 0
      %p51 = por %p49, %p50
      %s53 = sadd.s32 %s52, 1
      %p56 = scmp.eq.s32.totalorder %s18, 1
      %p57 = scmp.ne.s32.totalorder %s52, %s54
      %p58 = scmp.eq.s32.totalorder %s18, 0
      %p59 = por %p57, %p58
      %p60 = scmp.ne.s32.totalorder %s52, %s54
      %p61 = scmp.eq.s32.totalorder %s23, 1
      %p62 = por %p60, %p61
      %p63 = scmp.ne.s32.totalorder %s54, %s55
      %p64 = scmp.eq.s32.totalorder %s23, 0
      %p65 = por %p63, %p64
      %p66 = scmp.ne.s32.totalorder %s54, %s55
      %p67 = scmp.eq.s32.totalorder %s24, 1
      %p68 = por %p66, %p67
      %p70 = scmp.ne.s32.totalorder %s55, %s69
      %p71 = scmp.eq.s32.totalorder %s24, 0
      %p72 = por %p70, %p71
      %s74 = sadd.s32 %s73, 1
      %p77 = scmp.eq.s32.totalorder %s18, 1
      %p78 = scmp.ne.s32.totalorder %s73, %s75
      %p79 = scmp.eq.s32.totalorder %s18, 0
      %p80 = por %p78, %p79
      %p81 = scmp.ne.s32.totalorder %s73, %s75
      %p82 = scmp.eq.s32.totalorder %s23, 1
      %p83 = por %p81, %p82
      %p84 = scmp.ne.s32.totalorder %s75, %s76
      %p85 = scmp.eq.s32.totalorder %s23, 0
      %p86 = por %p84, %p85
      %p87 = scmp.ne.s32.totalorder %s75, %s76
      %p88 = scmp.eq.s32.totalorder %s24, 1
      %p89 = por %p87, %p88
      %p91 = scmp.ne.s32.totalorder %s76, %s90
      %p92 = scmp.eq.s32.totalorder %s24, 0
      %p93 = por %p91, %p92
      %s95 = sadd.s32 %s94, 1
      %p98 = scmp.eq.s32.totalorder %s18, 1
      %p99 = scmp.ne.s32.totalorder %s94, %s96
      %p100 = scmp.eq.s32.totalorder %s18, 0
      %p101 = por %p99, %p100
      %p102 = scmp.ne.s32.totalorder %s94, %s96
      %p103 = scmp.eq.s32.totalorder %s23, 1
      %p104 = por %p102, %p103
      %p105 = scmp.ne.s32.totalorder %s96, %s97
      %p106 = scmp.eq.s32.totalorder %s23, 0
      %p107 = por %p105, %p106
      %p108 = scmp.ne.s32.totalorder %s96, %s97
      %p109 = scmp.eq.s32.totalorder %s24, 1
      %p110 = por %p108, %p109
      %p112 = scmp.ne.s32.totalorder %s97, %s111
      %p113 = scmp.eq.s32.totalorder %s24, 0
      %p114 = por %p112, %p113
      %s116 = sadd.s32 %s115, 1
      %p119 = scmp.eq.s32.totalorder %s18, 1
      %p120 = scmp.ne.s32.totalorder %s115, %s117
      %p121 = scmp.eq.s32.totalorder %s18, 0
      %p122 = por %p120, %p121
      %p123 = scmp.ne.s32.totalorder %s115, %s117
      %p124 = scmp.eq.s32.totalorder %s23, 1
      %p125 = por %p123, %p124
      %p126 = scmp.ne.s32.totalorder %s117, %s118
      %p127 = scmp.eq.s32.totalorder %s23, 0
      %p128 = por %p126, %p127
      %p129 = scmp.ne.s32.totalorder %s117, %s118
      %p130 = scmp.eq.s32.totalorder %s24, 1
      %p131 = por %p129, %p130
      %p133 = scmp.ne.s32.totalorder %s118, %s132
      %p134 = scmp.eq.s32.totalorder %s24, 0
      %p135 = por %p133, %p134
      %s137 = sadd.s32 %s136, 1
      %p140 = scmp.eq.s32.totalorder %s18, 1
      %p141 = scmp.ne.s32.totalorder %s136, %s138
      %p142 = scmp.eq.s32.totalorder %s18, 0
      %p143 = por %p141, %p142
      %p144 = scmp.ne.s32.totalorder %s136, %s138
      %p145 = scmp.eq.s32.totalorder %s23, 1
      %p146 = por %p144, %p145
      %p147 = scmp.ne.s32.totalorder %s138, %s139
      %p148 = scmp.eq.s32.totalorder %s23, 0
      %p149 = por %p147, %p148
      %p150 = scmp.ne.s32.totalorder %s138, %s139
      %p151 = scmp.eq.s32.totalorder %s24, 1
      %p152 = por %p150, %p151
      %p154 = scmp.ne.s32.totalorder %s139, %s153
      %p155 = scmp.eq.s32.totalorder %s24, 0
      %p156 = por %p154, %p155
      %s158 = sadd.s32 %s157, 1
      %p161 = scmp.eq.s32.totalorder %s18, 1
      %p162 = scmp.ne.s32.totalorder %s157, %s159
      %p163 = scmp.eq.s32.totalorder %s18, 0
      %p164 = por %p162, %p163
      %p165 = scmp.ne.s32.totalorder %s157, %s159
      %p166 = scmp.eq.s32.totalorder %s23, 1
      %p167 = por %p165, %p166
      %p168 = scmp.ne.s32.totalorder %s159, %s160
      %p169 = scmp.eq.s32.totalorder %s23, 0
      %p170 = por %p168, %p169
      %p171 = scmp.ne.s32.totalorder %s159, %s160
      %p172 = scmp.eq.s32.totalorder %s24, 1
      %p173 = por %p171, %p172
      %p175 = scmp.ne.s32.totalorder %s160, %s174
      %p176 = scmp.eq.s32.totalorder %s24, 0
      %p177 = por %p175, %p176
      %s179 = sadd.s32 %s178, 1
      %p182 = scmp.eq.s32.totalorder %s18, 1
      %p183 = scmp.ne.s32.totalorder %s178, %s180
      %p184 = scmp.eq.s32.totalorder %s18, 0
      %p185 = por %p183, %p184
      %p186 = scmp.ne.s32.totalorder %s178, %s180
      %p187 = scmp.eq.s32.totalorder %s23, 1
      %p188 = por %p186, %p187
      %p189 = scmp.ne.s32.totalorder %s180, %s181
      %p190 = scmp.eq.s32.totalorder %s23, 0
      %p191 = por %p189, %p190
      %p192 = scmp.ne.s32.totalorder %s180, %s181
      %p193 = scmp.eq.s32.totalorder %s24, 1
      %p194 = por %p192, %p193
      %p196 = scmp.ne.s32.totalorder %s181, %s195
      %p197 = scmp.eq.s32.totalorder %s24, 0
      %p198 = por %p196, %p197
      %s200 = sadd.s32 %s199, 1
      %p203 = scmp.eq.s32.totalorder %s18, 1
      %p204 = scmp.ne.s32.totalorder %s199, %s201
      %p205 = scmp.eq.s32.totalorder %s18, 0
      %p206 = por %p204, %p205
      %p207 = scmp.ne.s32.totalorder %s199, %s201
      %p208 = scmp.eq.s32.totalorder %s23, 1
      %p209 = por %p207, %p208
      %p210 = scmp.ne.s32.totalorder %s201, %s202
      %p211 = scmp.eq.s32.totalorder %s23, 0
      %p212 = por %p210, %p211
      %p213 = scmp.ne.s32.totalorder %s201, %s202
      %p214 = scmp.eq.s32.totalorder %s24, 1
      %p215 = por %p213, %p214
      %p217 = scmp.ne.s32.totalorder %s202, %s216
      %p218 = scmp.eq.s32.totalorder %s24, 0
      %p219 = por %p217, %p218
      %s220 = ssub.s32 %s18, %s25
      %p221 = scmp.eq.s32.totalorder %s220, 0
      %s223 = sadd.s32 %s222, 1
      %s224 = scalar_select %p221, %s222, %s223
      %p227 = pneg %p221
      %p228 = scmp.eq.s32.totalorder %s18, 1
      %p229 = por %p227, %p228
      %p230 = scmp.ne.s32.totalorder %s222, %s225
      %p231 = scmp.eq.s32.totalorder %s18, 0
      %p232 = por %p230, %p231
      %p233 = scmp.ne.s32.totalorder %s222, %s225
      %p234 = scmp.eq.s32.totalorder %s23, 1
      %p235 = por %p233, %p234
      %p236 = scmp.ne.s32.totalorder %s225, %s226
      %p237 = scmp.eq.s32.totalorder %s23, 0
      %p238 = por %p236, %p237
      %p239 = scmp.ne.s32.totalorder %s225, %s226
      %p240 = scmp.eq.s32.totalorder %s24, 1
      %p241 = por %p239, %p240
      %p243 = scmp.ne.s32.totalorder %s226, %s242
      %p244 = scmp.eq.s32.totalorder %s24, 0
      %p245 = por %p243, %p244
      %p246 = scmp.le.s32.totalorder 1, %s18
      %p247 = scmp.lt.s32.totalorder %s18, 3
      %p248 = pnand %p246, %p247
      %p249 = pneg %p248
      // Predicated region
      $region9: #{tpu_custom_call.1} parent=5 // pred_check
        _
      $region10: #{tpu_custom_call.1} parent=5 // pred_check_branch
        %251 = sbr.rel (%p248) target = $region12
      $region11: #{tpu_custom_call.1} parent=5 // pred_region
        %s252 = ssub.s32 %s18, 1
        // Predicated region
        $region13: #{tpu_custom_call.1} parent=11 // pred_check
          %p253 = pneg %p65
        $region14: #{tpu_custom_call.1} parent=11 // pred_check_branch
          %255 = sbr.rel (%p253) target = $region16
        $region15: #{tpu_custom_call.1} parent=11 // pred_region
          _
        $region16: #{tpu_custom_call.1} parent=11 // pred_fallthru
          _
        // Predicated region
        $region17: #{tpu_custom_call.1} parent=11 // pred_check
          %p256 = pneg %p86
        $region18: #{tpu_custom_call.1} parent=11 // pred_check_branch
          %258 = sbr.rel (%p256) target = $region20
        $region19: #{tpu_custom_call.1} parent=11 // pred_region
          _
        $region20: #{tpu_custom_call.1} parent=11 // pred_fallthru
          _
        // Predicated region
        $region21: #{tpu_custom_call.1} parent=11 // pred_check
          %p259 = pneg %p107
        $region22: #{tpu_custom_call.1} parent=11 // pred_check_branch
          %261 = sbr.rel (%p259) target = $region24
        $region23: #{tpu_custom_call.1} parent=11 // pred_region
          _
        $region24: #{tpu_custom_call.1} parent=11 // pred_fallthru
          _
        // Predicated region
        $region25: #{tpu_custom_call.1} parent=11 // pred_check
          %p262 = pneg %p128
        $region26: #{tpu_custom_call.1} parent=11 // pred_check_branch
          %264 = sbr.rel (%p262) target = $region28
        $region27: #{tpu_custom_call.1} parent=11 // pred_region
          _
        $region28: #{tpu_custom_call.1} parent=11 // pred_fallthru
          _
        // Predicated region
        $region29: #{tpu_custom_call.1} parent=11 // pred_check
          %p265 = pneg %p149
        $region30: #{tpu_custom_call.1} parent=11 // pred_check_branch
          %267 = sbr.rel (%p265) target = $region32
        $region31: #{tpu_custom_call.1} parent=11 // pred_region
          _
        $region32: #{tpu_custom_call.1} parent=11 // pred_fallthru
          _
        // Predicated region
        $region33: #{tpu_custom_call.1} parent=11 // pred_check
          %p268 = pneg %p170
        $region34: #{tpu_custom_call.1} parent=11 // pred_check_branch
          %270 = sbr.rel (%p268) target = $region36
        $region35: #{tpu_custom_call.1} parent=11 // pred_region
          _
        $region36: #{tpu_custom_call.1} parent=11 // pred_fallthru
          _
        // Predicated region
        $region37: #{tpu_custom_call.1} parent=11 // pred_check
          %p271 = pneg %p191
        $region38: #{tpu_custom_call.1} parent=11 // pred_check_branch
          %273 = sbr.rel (%p271) target = $region40
        $region39: #{tpu_custom_call.1} parent=11 // pred_region
          _
        $region40: #{tpu_custom_call.1} parent=11 // pred_fallthru
          _
        // Predicated region
        $region41: #{tpu_custom_call.1} parent=11 // pred_check
          %p274 = pneg %p212
        $region42: #{tpu_custom_call.1} parent=11 // pred_check_branch
          %276 = sbr.rel (%p274) target = $region44
        $region43: #{tpu_custom_call.1} parent=11 // pred_region
          _
        $region44: #{tpu_custom_call.1} parent=11 // pred_fallthru
          _
      $region12: #{tpu_custom_call.1} parent=5 // pred_fallthru
        _
      %p277 = scmp.lt.s32.totalorder %s18, 2
      // Predicated region
      $region45: #{tpu_custom_call.1} parent=5 // pred_check
        %p278 = pneg %p277
      $region46: #{tpu_custom_call.1} parent=5 // pred_check_branch
        %280 = sbr.rel (%p278) target = $region48
      $region47: #{tpu_custom_call.1} parent=5 // pred_region
        // Predicated region
        $region49: #{tpu_custom_call.1} parent=47 // pred_check
          %p281 = pneg %p38
        $region50: #{tpu_custom_call.1} parent=47 // pred_check_branch
          %283 = sbr.rel (%p281) target = $region52
        $region51: #{tpu_custom_call.1} parent=47 // pred_region
          %p284 = scmp.lt.s32.totalorder %s18, 1
          %s285 = scalar_select %p284, %s18, 1
          %s286 = smul.addr %s285, 2
          %s287 = smul.addr %s286, 8
          %s288 = scalar_lea.vmem %s0, %s287
        $region52: #{tpu_custom_call.1} parent=47 // pred_fallthru
          _
      $region48: #{tpu_custom_call.1} parent=5 // pred_fallthru
        _
      %p289 = scmp.le.s32.totalorder 1, %s18
      %p290 = scmp.lt.s32.totalorder %s18, 3
      %p291 = pnand %p289, %p290
      %p292 = pneg %p291
      // Predicated region
      $region53: #{tpu_custom_call.1} parent=5 // pred_check
        _
      $region54: #{tpu_custom_call.1} parent=5 // pred_check_branch
        %294 = sbr.rel (%p291) target = $region56
      $region55: #{tpu_custom_call.1} parent=5 // pred_region
        %s295 = ssub.s32 %s18, 1
        %p296 = scmp.lt.s32.totalorder %s23, 1
        %s297 = scalar_select %p296, %s23, 1
        %s298 = smul.addr %s297, 2
        %s299 = smul.addr %s298, 8
        %s300 = scalar_lea.vmem %s0, %s299
        %p301 = pneg %p44
        %p302 = pneg %p41
        %p303 = pneg %p65
        %p304 = pneg %p62
        %p305 = pneg %p86
        %p306 = pneg %p83
        %p307 = pneg %p107
        %p308 = pneg %p104
        %p309 = pneg %p128
        %p310 = pneg %p125
        %p311 = pneg %p149
        %p312 = pneg %p146
        %p313 = pneg %p170
        %p314 = pneg %p167
        %p315 = pneg %p191
        %p316 = pneg %p188
        %p317 = pneg %p212
        %p318 = pneg %p209
        %p319 = pneg %p238
        %p320 = pneg %p235
        %s321 = sand.u32 %s225, 1
        %s322 = scalar_lea.sflag [#allocation3], %s321
        %s323 = sand.u32 %s225, 1
        %s324 = scalar_lea.vmem [#allocation2], %s323
        %p325 = scmp.lt.s32.totalorder %s23, 1
        %s326 = scalar_select %p325, %s23, 1
        %s327 = smul.addr %s326, 2
        %s328 = smul.addr %s327, 8
        %s329 = scalar_lea.vmem %s0, %s328
        %v330 = vld [vmem:[%s329] sm:$0xff]
        %v331 = vld [vmem:[%s329 + $0x8] sm:$0xff]
        %v332 = vld [vmem:[%s1] sm:$0xff]
        %v333 = vld [vmem:[%s1 + $0x8] sm:$0xf]
        %v334 = vld [vmem:[%s3] sm:$0x1]
        %vm337 = vcmask 1046528
        %v338 = vrot.slane %v330, 1
        %v339 = vrot.slane %v331, 1
        %v340 = vsel %vm337, %v338, %v339
        %341 = vrot.lane.b32.xlu0 %v340, 4
        %v342 = vpop.permute.xlu0 %341
        %343 = vrot.lane.b32.xlu0 %v339, 4
        %v344 = vpop.permute.xlu0 %343
        %vm347 = vcmask 1045504
        %v348 = vrot.slane %v330, 2
        %v349 = vrot.slane %v331, 2
        %v350 = vsel %vm347, %v348, %v349
        %351 = vrot.lane.b32.xlu0 %v350, 8
        %v352 = vpop.permute.xlu0 %351
        %353 = vrot.lane.b32.xlu0 %v349, 8
        %v354 = vpop.permute.xlu0 %353
        %vm357 = vcmask 31744
        %v358 = vsel %vm357, %v330, %v342
        %v359 = vsel %vm357, %v331, %v344
        %vm360 = vcmask 64512
        %v361 = vsel %vm360, %v358, %v352
        %v362 = vsel %vm360, %v359, %v354
        %v364 = vlaneseq
        %v365 = vshrl.u32 %v364, 7
        %v366 = vsub.s32 0, %v365
        %v367 = vrot.slane %v334, %v366
        %vm369 = vcmask 97280
        %v371 = vsel %vm369, %v361, 0
        %v374 = vsel %vm369, %v362, 0
        %vm376 = vcmask 1043456
        %v378 = vsel %vm376, %v333, 0
        %380 = vmatprep.subr.mxu0 0.0
        %381 = vmatpush1.msra.mxu0 %v332
        %382 = vmatprep.subr.mxu0 0.0
        %383 = vmatpush1.msra.mxu0 %v378
        %384 = vmatprep.subr.mxu0 0.0
        %385 = vmatpush1.msra.mxu0 0.0
        %386 = vmatprep.subr.mxu0 0.0
        %387 = vmatpush1.msra.mxu0 0.0
        %388 = vmatprep.subr.mxu0 0.0
        %389 = vmatpush1.msra.mxu0 0.0
        %390 = vmatprep.subr.mxu0 0.0
        %391 = vmatpush1.msra.mxu0 0.0
        %392 = vmatprep.subr.mxu0 0.0
        %393 = vmatpush1.msra.mxu0 0.0
        %394 = vmatprep.subr.mxu0 0.0
        %395 = vmatpush1.msra.mxu0 0.0
        %396 = vmatprep.subr.mxu0 0.0
        %397 = vmatpush1.msra.mxu0 0.0
        %398 = vmatprep.subr.mxu0 0.0
        %399 = vmatpush1.msra.mxu0 0.0
        %400 = vmatprep.subr.mxu0 0.0
        %401 = vmatpush1.msra.mxu0 0.0
        %402 = vmatprep.subr.mxu0 0.0
        %403 = vmatpush1.msra.mxu0 0.0
        %404 = vmatprep.subr.mxu0 0.0
        %405 = vmatpush1.msra.mxu0 0.0
        %406 = vmatprep.subr.mxu0 0.0
        %407 = vmatpush1.msra.mxu0 0.0
        %408 = vmatprep.subr.mxu0 0.0
        %409 = vmatpush1.msra.mxu0 0.0
        %410 = vmatprep.subr.mxu0 0.0
        %411 = vmatpush1.msra.mxu0 0.0
        %412 = vmatprep.subr.mxu0 0.0
        %413 = vmatpush1.msra.mxu0 0.0
        %414 = vmatprep.subr.mxu0 0.0
        %415 = vmatpush1.msra.mxu0 0.0
        %416 = vmatprep.subr.mxu0 0.0
        %417 = vmatpush1.msra.mxu0 0.0
        %418 = vmatprep.subr.mxu0 0.0
        %419 = vmatpush1.msra.mxu0 0.0
        %420 = vmatprep.subr.mxu0 0.0
        %421 = vmatpush1.msra.mxu0 0.0
        %422 = vmatprep.subr.mxu0 0.0
        %423 = vmatpush1.msra.mxu0 0.0
        %424 = vmatprep.subr.mxu0 0.0
        %425 = vmatpush1.msra.mxu0 0.0
        %426 = vmatprep.subr.mxu0 0.0
        %427 = vmatpush1.msra.mxu0 0.0
        %428 = vmatprep.subr.mxu0 0.0
        %429 = vmatpush1.msra.mxu0 0.0
        %430 = vmatprep.subr.mxu0 0.0
        %431 = vmatpush1.msra.mxu0 0.0
        %432 = vmatprep.subr.mxu0 0.0
        %433 = vmatpush1.msra.mxu0 0.0
        %434 = vmatprep.subr.mxu0 0.0
        %435 = vmatpush1.msra.mxu0 0.0
        %436 = vmatprep.subr.mxu0 0.0
        %437 = vmatpush1.msra.mxu0 0.0
        %438 = vmatprep.subr.mxu0 0.0
        %439 = vmatpush1.msra.mxu0 0.0
        %440 = vmatprep.subr.mxu0 0.0
        %441 = vmatpush1.msra.mxu0 0.0
        %442 = vmatprep.subr.mxu0 0.0
        %443 = vmatpush1.msra.mxu0 0.0
        %444 = vmatprep.mubr.f32.mxu0 0.0
        %445 = vmatmul.mubr.f32.gmra.mrb[0].mxu0 %v371
        %v446 = vpop.f32.mrb[0].mxu0
        %v447 = vadd.f32 %v367, %v446
        %v448 = vpop.f32.mrb[0].mxu0
        %449 = vmatprep.mubr.f32.mxu0 0.0
        %450 = vmatmul.mubr.f32.gmra.mrb[0].mxu0 %v374
        %v451 = vpop.f32.mrb[0].mxu0
        %v452 = vadd.f32 %v367, %v451
        %v453 = vpop.f32.mrb[0].mxu0
        %454 = vdwg.mxu0
        %v455 = vmax.f32 %v447, 0.0
        %v456 = vmax.f32 %v452, 0.0
        %v459 = vrot.slane %v455, 1
        %v460 = vrot.slane %v456, 1
        %v461 = vsel %vm337, %v459, %v460
        %v464 = vmax.f32 %v455, %v461
        %v465 = vmax.f32 %v456, %v460
        %v466 = vrot.slane %v455, 2
        %v467 = vrot.slane %v456, 2
        %v468 = vsel %vm347, %v466, %v467
        %v471 = vmax.f32 %v464, %v468
        %v472 = vmax.f32 %v465, %v467
        %v473 = vld [vmem:[%s2] sm:$0xff]
        %v474 = vld [vmem:[%s2 + $0x8] sm:$0xff]
        %v475 = vld [vmem:[%s2 + $0x10] sm:$0xff]
        %v476 = vld [vmem:[%s4] sm:$0x1]
        %v479 = vrot.slane %v471, 1
        %v480 = vrot.slane %v472, 1
        %v481 = vsel %vm337, %v479, %v480
        %482 = vrot.lane.b32.xlu0 %v481, 8
        %v483 = vpop.permute.xlu0 %482
        %484 = vrot.lane.b32.xlu0 %v480, 8
        %v485 = vpop.permute.xlu0 %484
        %v488 = vrot.slane %v471, 2
        %v489 = vrot.slane %v472, 2
        %v490 = vsel %vm347, %v488, %v489
        %491 = vrot.lane.b32.xlu0 %v490, 16
        %v492 = vpop.permute.xlu0 %491
        %493 = vrot.lane.b32.xlu0 %v489, 16
        %v494 = vpop.permute.xlu0 %493
        %v497 = vsel %vm360, %v471, %v483
        %v498 = vsel %vm360, %v472, %v485
        %vm499 = vcmask 130048
        %v500 = vsel %vm499, %v497, %v492
        %v501 = vsel %vm499, %v498, %v494
        %v503 = vlaneseq
        %v504 = vshrl.u32 %v503, 7
        %v505 = vsub.s32 0, %v504
        %v506 = vrot.slane %v476, %v505
        %vm508 = vcmask 195584
        %v510 = vsel %vm508, %v500, 0
        %v513 = vsel %vm508, %v501, 0
        %515 = vmatprep.subr.mxu0 0.0
        %516 = vmatpush1.msra.mxu0 %v473
        %517 = vmatprep.subr.mxu0 0.0
        %518 = vmatpush1.msra.mxu0 %v474
        %519 = vmatprep.subr.mxu0 0.0
        %520 = vmatpush1.msra.mxu0 %v475
        %521 = vmatprep.subr.mxu0 0.0
        %522 = vmatpush1.msra.mxu0 0.0
        %523 = vmatprep.subr.mxu0 0.0
        %524 = vmatpush1.msra.mxu0 0.0
        %525 = vmatprep.subr.mxu0 0.0
        %526 = vmatpush1.msra.mxu0 0.0
        %527 = vmatprep.subr.mxu0 0.0
        %528 = vmatpush1.msra.mxu0 0.0
        %529 = vmatprep.subr.mxu0 0.0
        %530 = vmatpush1.msra.mxu0 0.0
        %531 = vmatprep.subr.mxu0 0.0
        %532 = vmatpush1.msra.mxu0 0.0
        %533 = vmatprep.subr.mxu0 0.0
        %534 = vmatpush1.msra.mxu0 0.0
        %535 = vmatprep.subr.mxu0 0.0
        %536 = vmatpush1.msra.mxu0 0.0
        %537 = vmatprep.subr.mxu0 0.0
        %538 = vmatpush1.msra.mxu0 0.0
        %539 = vmatprep.subr.mxu0 0.0
        %540 = vmatpush1.msra.mxu0 0.0
        %541 = vmatprep.subr.mxu0 0.0
        %542 = vmatpush1.msra.mxu0 0.0
        %543 = vmatprep.subr.mxu0 0.0
        %544 = vmatpush1.msra.mxu0 0.0
        %545 = vmatprep.subr.mxu0 0.0
        %546 = vmatpush1.msra.mxu0 0.0
        %547 = vmatprep.subr.mxu0 0.0
        %548 = vmatpush1.msra.mxu0 0.0
        %549 = vmatprep.subr.mxu0 0.0
        %550 = vmatpush1.msra.mxu0 0.0
        %551 = vmatprep.subr.mxu0 0.0
        %552 = vmatpush1.msra.mxu0 0.0
        %553 = vmatprep.subr.mxu0 0.0
        %554 = vmatpush1.msra.mxu0 0.0
        %555 = vmatprep.subr.mxu0 0.0
        %556 = vmatpush1.msra.mxu0 0.0
        %557 = vmatprep.subr.mxu0 0.0
        %558 = vmatpush1.msra.mxu0 0.0
        %559 = vmatprep.subr.mxu0 0.0
        %560 = vmatpush1.msra.mxu0 0.0
        %561 = vmatprep.subr.mxu0 0.0
        %562 = vmatpush1.msra.mxu0 0.0
        %563 = vmatprep.subr.mxu0 0.0
        %564 = vmatpush1.msra.mxu0 0.0
        %565 = vmatprep.subr.mxu0 0.0
        %566 = vmatpush1.msra.mxu0 0.0
        %567 = vmatprep.subr.mxu0 0.0
        %568 = vmatpush1.msra.mxu0 0.0
        %569 = vmatprep.subr.mxu0 0.0
        %570 = vmatpush1.msra.mxu0 0.0
        %571 = vmatprep.subr.mxu0 0.0
        %572 = vmatpush1.msra.mxu0 0.0
        %573 = vmatprep.subr.mxu0 0.0
        %574 = vmatpush1.msra.mxu0 0.0
        %575 = vmatprep.subr.mxu0 0.0
        %576 = vmatpush1.msra.mxu0 0.0
        %577 = vmatprep.subr.mxu0 0.0
        %578 = vmatpush1.msra.mxu0 0.0
        %579 = vmatprep.mubr.f32.mxu0 0.0
        %580 = vmatmul.mubr.f32.gmra.mrb[0].mxu0 %v510
        %v581 = vpop.f32.mrb[0].mxu0
        %v582 = vadd.f32 %v506, %v581
        %v583 = vpop.f32.mrb[0].mxu0
        %584 = vmatprep.mubr.f32.mxu0 0.0
        %585 = vmatmul.mubr.f32.gmra.mrb[0].mxu0 %v513
        %v586 = vpop.f32.mrb[0].mxu0
        %v587 = vadd.f32 %v506, %v586
        %v588 = vpop.f32.mrb[0].mxu0
        %589 = vdwg.mxu0
        %v590 = vmax.f32 %v582, 0.0
        %v591 = vmax.f32 %v587, 0.0
        %v594 = vrot.slane %v590, 1
        %v595 = vrot.slane %v591, 1
        %v596 = vsel %vm337, %v594, %v595
        %v598 = vmax.f32 %v590, %v596
        %v599 = vrot.slane %v590, 2
        %v600 = vrot.slane %v591, 2
        %v601 = vsel %vm347, %v599, %v600
        %v603 = vmax.f32 %v598, %v601
        %v604 = vld [vmem:[%s5] sm:$0xff]
        %v605 = vld [vmem:[%s5 + $0x8] sm:$0xff]
        %v606 = vld [vmem:[%s5 + $0x10] sm:$0xff]
        %v607 = vld [vmem:[%s5 + $0x18] sm:$0xff]
        %v608 = vld [vmem:[%s5 + $0x20] sm:$0xff]
        %v609 = vld [vmem:[%s5 + $0x28] sm:$0xff]
        %v610 = vld [vmem:[%s5 + $0x30] sm:$0xff]
        %v611 = vld [vmem:[%s5 + $0x38] sm:$0xff]
        %v612 = vld [vmem:[%s5 + $0x40] sm:$0xff]
        %v613 = vld [vmem:[%s5 + $0x48] sm:$0xff]
        %v614 = vld [vmem:[%s5 + $0x50] sm:$0xff]
        %v615 = vld [vmem:[%s5 + $0x58] sm:$0xff]
        %v616 = vld [vmem:[%s5 + $0x60] sm:$0xff]
        %v617 = vld [vmem:[%s5 + $0x68] sm:$0xff]
        %v618 = vld [vmem:[%s5 + $0x70] sm:$0xff]
        %v619 = vld [vmem:[%s5 + $0x78] sm:$0xff]
        %v620 = vcombine.high %v603, 0.0
        %v622 = vunpack.c.l.s4 1983009808
        %v623 = vunpack.c.0.s8 %v622
        %v624 = vlaneseq
        %v625 = vshrl.u32 %v624, 7
        %v626 = vsub.s32 %v623, %v625
        %v627 = vrot.slane %v603, %v626
        %v629 = vunpack.c.l.s4 1983009808
        %v630 = vunpack.c.0.s8 %v629
        %v631 = vlaneseq
        %v632 = vshrl.u32 %v631, 7
        %v633 = vsub.s32 %v630, %v632
        %v634 = vrot.slane %v620, %v633
        %v635 = vcombine.high %v627, 0.0
        %v637 = vunpack.c.l.s4 1934713408
        %v638 = vunpack.c.0.s8 %v637
        %v639 = vlaneseq
        %v640 = vshrl.u32 %v639, 7
        %v641 = vsub.s32 %v638, %v640
        %v642 = vrot.slane %v627, %v641
        %v644 = vunpack.c.l.s4 1934713408
        %v645 = vunpack.c.0.s8 %v644
        %v646 = vlaneseq
        %v647 = vshrl.u32 %v646, 7
        %v648 = vsub.s32 %v645, %v647
        %v649 = vrot.slane %v635, %v648
        %v650 = vcombine.high %v634, 0.0
        %v652 = vunpack.c.l.s4 1934713408
        %v653 = vunpack.c.0.s8 %v652
        %v654 = vlaneseq
        %v655 = vshrl.u32 %v654, 7
        %v656 = vsub.s32 %v653, %v655
        %v657 = vrot.slane %v634, %v656
        %v659 = vunpack.c.l.s4 1934713408
        %v660 = vunpack.c.0.s8 %v659
        %v661 = vlaneseq
        %v662 = vshrl.u32 %v661, 7
        %v663 = vsub.s32 %v660, %v662
        %v664 = vrot.slane %v650, %v663
        %v665 = vcombine.high %v642, 0.0
        %v666 = vcombine.high %v649, 0.0
        %v667 = vcombine.high %v657, 0.0
        %v668 = vcombine.high %v664, 0.0
        %v670 = vsel %vm499, %v642, 0
        %672 = vmatprep.subr.mxu0 0.0
        %673 = vmatpush1.msra.mxu0 %v604
        %674 = vmatprep.subr.mxu0 0.0
        %675 = vmatpush1.msra.mxu0 %v605
        %676 = vmatprep.subr.mxu0 0.0
        %677 = vmatpush1.msra.mxu0 0.0
        %678 = vmatprep.subr.mxu0 0.0
        %679 = vmatpush1.msra.mxu0 0.0
        %680 = vmatprep.subr.mxu0 0.0
        %681 = vmatpush1.msra.mxu0 0.0
        %682 = vmatprep.subr.mxu0 0.0
        %683 = vmatpush1.msra.mxu0 0.0
        %684 = vmatprep.subr.mxu0 0.0
        %685 = vmatpush1.msra.mxu0 0.0
        %686 = vmatprep.subr.mxu0 0.0
        %687 = vmatpush1.msra.mxu0 0.0
        %688 = vmatprep.subr.mxu0 0.0
        %689 = vmatpush1.msra.mxu0 0.0
        %690 = vmatprep.subr.mxu0 0.0
        %691 = vmatpush1.msra.mxu0 0.0
        %692 = vmatprep.subr.mxu0 0.0
        %693 = vmatpush1.msra.mxu0 0.0
        %694 = vmatprep.subr.mxu0 0.0
        %695 = vmatpush1.msra.mxu0 0.0
        %696 = vmatprep.subr.mxu0 0.0
        %697 = vmatpush1.msra.mxu0 0.0
        %698 = vmatprep.subr.mxu0 0.0
        %699 = vmatpush1.msra.mxu0 0.0
        %700 = vmatprep.subr.mxu0 0.0
        %701 = vmatpush1.msra.mxu0 0.0
        %702 = vmatprep.subr.mxu0 0.0
        %703 = vmatpush1.msra.mxu0 0.0
        %704 = vmatprep.subr.mxu0 0.0
        %705 = vmatpush1.msra.mxu0 0.0
        %706 = vmatprep.subr.mxu0 0.0
        %707 = vmatpush1.msra.mxu0 0.0
        %708 = vmatprep.subr.mxu0 0.0
        %709 = vmatpush1.msra.mxu0 0.0
        %710 = vmatprep.subr.mxu0 0.0
        %711 = vmatpush1.msra.mxu0 0.0
        %712 = vmatprep.subr.mxu0 0.0
        %713 = vmatpush1.msra.mxu0 0.0
        %714 = vmatprep.subr.mxu0 0.0
        %715 = vmatpush1.msra.mxu0 0.0
        %716 = vmatprep.subr.mxu0 0.0
        %717 = vmatpush1.msra.mxu0 0.0
        %718 = vmatprep.subr.mxu0 0.0
        %719 = vmatpush1.msra.mxu0 0.0
        %720 = vmatprep.subr.mxu0 0.0
        %721 = vmatpush1.msra.mxu0 0.0
        %722 = vmatprep.subr.mxu0 0.0
        %723 = vmatpush1.msra.mxu0 0.0
        %724 = vmatprep.subr.mxu0 0.0
        %725 = vmatpush1.msra.mxu0 0.0
        %726 = vmatprep.subr.mxu0 0.0
        %727 = vmatpush1.msra.mxu0 0.0
        %728 = vmatprep.subr.mxu0 0.0
        %729 = vmatpush1.msra.mxu0 0.0
        %730 = vmatprep.subr.mxu0 0.0
        %731 = vmatpush1.msra.mxu0 0.0
        %732 = vmatprep.subr.mxu0 0.0
        %733 = vmatpush1.msra.mxu0 0.0
        %734 = vmatprep.subr.mxu0 0.0
        %735 = vmatpush1.msra.mxu0 0.0
        %736 = vmatprep.mubr.f32.mxu0 0.0
        %737 = vmatmul.mubr.f32.gmra.mrb[0].mxu0 %v670
        %v738 = vpop.f32.mrb[0].mxu0
        %v739 = vadd.f32 0.0, %v738
        %v740 = vpop.f32.mrb[0].mxu0
        %741 = vdwg.mxu0
        %v743 = vsel %vm499, %v665, 0
        %745 = vmatprep.subr.mxu0 0.0
        %746 = vmatpush1.msra.mxu0 %v606
        %747 = vmatprep.subr.mxu0 0.0
        %748 = vmatpush1.msra.mxu0 %v607
        %749 = vmatprep.subr.mxu0 0.0
        %750 = vmatpush1.msra.mxu0 0.0
        %751 = vmatprep.subr.mxu0 0.0
        %752 = vmatpush1.msra.mxu0 0.0
        %753 = vmatprep.subr.mxu0 0.0
        %754 = vmatpush1.msra.mxu0 0.0
        %755 = vmatprep.subr.mxu0 0.0
        %756 = vmatpush1.msra.mxu0 0.0
        %757 = vmatprep.subr.mxu0 0.0
        %758 = vmatpush1.msra.mxu0 0.0
        %759 = vmatprep.subr.mxu0 0.0
        %760 = vmatpush1.msra.mxu0 0.0
        %761 = vmatprep.subr.mxu0 0.0
        %762 = vmatpush1.msra.mxu0 0.0
        %763 = vmatprep.subr.mxu0 0.0
        %764 = vmatpush1.msra.mxu0 0.0
        %765 = vmatprep.subr.mxu0 0.0
        %766 = vmatpush1.msra.mxu0 0.0
        %767 = vmatprep.subr.mxu0 0.0
        %768 = vmatpush1.msra.mxu0 0.0
        %769 = vmatprep.subr.mxu0 0.0
        %770 = vmatpush1.msra.mxu0 0.0
        %771 = vmatprep.subr.mxu0 0.0
        %772 = vmatpush1.msra.mxu0 0.0
        %773 = vmatprep.subr.mxu0 0.0
        %774 = vmatpush1.msra.mxu0 0.0
        %775 = vmatprep.subr.mxu0 0.0
        %776 = vmatpush1.msra.mxu0 0.0
        %777 = vmatprep.subr.mxu0 0.0
        %778 = vmatpush1.msra.mxu0 0.0
        %779 = vmatprep.subr.mxu0 0.0
        %780 = vmatpush1.msra.mxu0 0.0
        %781 = vmatprep.subr.mxu0 0.0
        %782 = vmatpush1.msra.mxu0 0.0
        %783 = vmatprep.subr.mxu0 0.0
        %784 = vmatpush1.msra.mxu0 0.0
        %785 = vmatprep.subr.mxu0 0.0
        %786 = vmatpush1.msra.mxu0 0.0
        %787 = vmatprep.subr.mxu0 0.0
        %788 = vmatpush1.msra.mxu0 0.0
        %789 = vmatprep.subr.mxu0 0.0
        %790 = vmatpush1.msra.mxu0 0.0
        %791 = vmatprep.subr.mxu0 0.0
        %792 = vmatpush1.msra.mxu0 0.0
        %793 = vmatprep.subr.mxu0 0.0
        %794 = vmatpush1.msra.mxu0 0.0
        %795 = vmatprep.subr.mxu0 0.0
        %796 = vmatpush1.msra.mxu0 0.0
        %797 = vmatprep.subr.mxu0 0.0
        %798 = vmatpush1.msra.mxu0 0.0
        %799 = vmatprep.subr.mxu0 0.0
        %800 = vmatpush1.msra.mxu0 0.0
        %801 = vmatprep.subr.mxu0 0.0
        %802 = vmatpush1.msra.mxu0 0.0
        %803 = vmatprep.subr.mxu0 0.0
        %804 = vmatpush1.msra.mxu0 0.0
        %805 = vmatprep.subr.mxu0 0.0
        %806 = vmatpush1.msra.mxu0 0.0
        %807 = vmatprep.subr.mxu0 0.0
        %808 = vmatpush1.msra.mxu0 0.0
        %809 = vmatprep.mubr.f32.mxu0 0.0
        %810 = vmatmul.mubr.f32.gmra.mrb[0].mxu0 %v743
        %v811 = vpop.f32.mrb[0].mxu0
        %v812 = vadd.f32 0.0, %v811
        %v813 = vpop.f32.mrb[0].mxu0
        %814 = vdwg.mxu0
        %v816 = vsel %vm499, %v649, 0
        %818 = vmatprep.subr.mxu0 0.0
        %819 = vmatpush1.msra.mxu0 %v608
        %820 = vmatprep.subr.mxu0 0.0
        %821 = vmatpush1.msra.mxu0 %v609
        %822 = vmatprep.subr.mxu0 0.0
        %823 = vmatpush1.msra.mxu0 0.0
        %824 = vmatprep.subr.mxu0 0.0
        %825 = vmatpush1.msra.mxu0 0.0
        %826 = vmatprep.subr.mxu0 0.0
        %827 = vmatpush1.msra.mxu0 0.0
        %828 = vmatprep.subr.mxu0 0.0
        %829 = vmatpush1.msra.mxu0 0.0
        %830 = vmatprep.subr.mxu0 0.0
        %831 = vmatpush1.msra.mxu0 0.0
        %832 = vmatprep.subr.mxu0 0.0
        %833 = vmatpush1.msra.mxu0 0.0
        %834 = vmatprep.subr.mxu0 0.0
        %835 = vmatpush1.msra.mxu0 0.0
        %836 = vmatprep.subr.mxu0 0.0
        %837 = vmatpush1.msra.mxu0 0.0
        %838 = vmatprep.subr.mxu0 0.0
        %839 = vmatpush1.msra.mxu0 0.0
        %840 = vmatprep.subr.mxu0 0.0
        %841 = vmatpush1.msra.mxu0 0.0
        %842 = vmatprep.subr.mxu0 0.0
        %843 = vmatpush1.msra.mxu0 0.0
        %844 = vmatprep.subr.mxu0 0.0
        %845 = vmatpush1.msra.mxu0 0.0
        %846 = vmatprep.subr.mxu0 0.0
        %847 = vmatpush1.msra.mxu0 0.0
        %848 = vmatprep.subr.mxu0 0.0
        %849 = vmatpush1.msra.mxu0 0.0
        %850 = vmatprep.subr.mxu0 0.0
        %851 = vmatpush1.msra.mxu0 0.0
        %852 = vmatprep.subr.mxu0 0.0
        %853 = vmatpush1.msra.mxu0 0.0
        %854 = vmatprep.subr.mxu0 0.0
        %855 = vmatpush1.msra.mxu0 0.0
        %856 = vmatprep.subr.mxu0 0.0
        %857 = vmatpush1.msra.mxu0 0.0
        %858 = vmatprep.subr.mxu0 0.0
        %859 = vmatpush1.msra.mxu0 0.0
        %860 = vmatprep.subr.mxu0 0.0
        %861 = vmatpush1.msra.mxu0 0.0
        %862 = vmatprep.subr.mxu0 0.0
        %863 = vmatpush1.msra.mxu0 0.0
        %864 = vmatprep.subr.mxu0 0.0
        %865 = vmatpush1.msra.mxu0 0.0
        %866 = vmatprep.subr.mxu0 0.0
        %867 = vmatpush1.msra.mxu0 0.0
        %868 = vmatprep.subr.mxu0 0.0
        %869 = vmatpush1.msra.mxu0 0.0
        %870 = vmatprep.subr.mxu0 0.0
        %871 = vmatpush1.msra.mxu0 0.0
        %872 = vmatprep.subr.mxu0 0.0
        %873 = vmatpush1.msra.mxu0 0.0
        %874 = vmatprep.subr.mxu0 0.0
        %875 = vmatpush1.msra.mxu0 0.0
        %876 = vmatprep.subr.mxu0 0.0
        %877 = vmatpush1.msra.mxu0 0.0
        %878 = vmatprep.subr.mxu0 0.0
        %879 = vmatpush1.msra.mxu0 0.0
        %880 = vmatprep.subr.mxu0 0.0
        %881 = vmatpush1.msra.mxu0 0.0
        %882 = vmatprep.mubr.f32.mxu0 0.0
        %883 = vmatmul.mubr.f32.gmra.mrb[0].mxu0 %v816
        %v884 = vpop.f32.mrb[0].mxu0
        %v885 = vadd.f32 0.0, %v884
        %v886 = vpop.f32.mrb[0].mxu0
        %887 = vdwg.mxu0
        %v889 = vsel %vm499, %v666, 0
        %891 = vmatprep.subr.mxu0 0.0
        %892 = vmatpush1.msra.mxu0 %v610
        %893 = vmatprep.subr.mxu0 0.0
        %894 = vmatpush1.msra.mxu0 %v611
        %895 = vmatprep.subr.mxu0 0.0
        %896 = vmatpush1.msra.mxu0 0.0
        %897 = vmatprep.subr.mxu0 0.0
        %898 = vmatpush1.msra.mxu0 0.0
        %899 = vmatprep.subr.mxu0 0.0
        %900 = vmatpush1.msra.mxu0 0.0
        %901 = vmatprep.subr.mxu0 0.0
        %902 = vmatpush1.msra.mxu0 0.0
        %903 = vmatprep.subr.mxu0 0.0
        %904 = vmatpush1.msra.mxu0 0.0
        %905 = vmatprep.subr.mxu0 0.0
        %906 = vmatpush1.msra.mxu0 0.0
        %907 = vmatprep.subr.mxu0 0.0
        %908 = vmatpush1.msra.mxu0 0.0
        %909 = vmatprep.subr.mxu0 0.0
        %910 = vmatpush1.msra.mxu0 0.0
        %911 = vmatprep.subr.mxu0 0.0
        %912 = vmatpush1.msra.mxu0 0.0
        %913 = vmatprep.subr.mxu0 0.0
        %914 = vmatpush1.msra.mxu0 0.0
        %915 = vmatprep.subr.mxu0 0.0
        %916 = vmatpush1.msra.mxu0 0.0
        %917 = vmatprep.subr.mxu0 0.0
        %918 = vmatpush1.msra.mxu0 0.0
        %919 = vmatprep.subr.mxu0 0.0
        %920 = vmatpush1.msra.mxu0 0.0
        %921 = vmatprep.subr.mxu0 0.0
        %922 = vmatpush1.msra.mxu0 0.0
        %923 = vmatprep.subr.mxu0 0.0
        %924 = vmatpush1.msra.mxu0 0.0
        %925 = vmatprep.subr.mxu0 0.0
        %926 = vmatpush1.msra.mxu0 0.0
        %927 = vmatprep.subr.mxu0 0.0
        %928 = vmatpush1.msra.mxu0 0.0
        %929 = vmatprep.subr.mxu0 0.0
        %930 = vmatpush1.msra.mxu0 0.0
        %931 = vmatprep.subr.mxu0 0.0
        %932 = vmatpush1.msra.mxu0 0.0
        %933 = vmatprep.subr.mxu0 0.0
        %934 = vmatpush1.msra.mxu0 0.0
        %935 = vmatprep.subr.mxu0 0.0
        %936 = vmatpush1.msra.mxu0 0.0
        %937 = vmatprep.subr.mxu0 0.0
        %938 = vmatpush1.msra.mxu0 0.0
        %939 = vmatprep.subr.mxu0 0.0
        %940 = vmatpush1.msra.mxu0 0.0
        %941 = vmatprep.subr.mxu0 0.0
        %942 = vmatpush1.msra.mxu0 0.0
        %943 = vmatprep.subr.mxu0 0.0
        %944 = vmatpush1.msra.mxu0 0.0
        %945 = vmatprep.subr.mxu0 0.0
        %946 = vmatpush1.msra.mxu0 0.0
        %947 = vmatprep.subr.mxu0 0.0
        %948 = vmatpush1.msra.mxu0 0.0
        %949 = vmatprep.subr.mxu0 0.0
        %950 = vmatpush1.msra.mxu0 0.0
        %951 = vmatprep.subr.mxu0 0.0
        %952 = vmatpush1.msra.mxu0 0.0
        %953 = vmatprep.subr.mxu0 0.0
        %954 = vmatpush1.msra.mxu0 0.0
        %955 = vmatprep.mubr.f32.mxu0 0.0
        %956 = vmatmul.mubr.f32.gmra.mrb[0].mxu0 %v889
        %v957 = vpop.f32.mrb[0].mxu0
        %v958 = vadd.f32 0.0, %v957
        %v959 = vpop.f32.mrb[0].mxu0
        %960 = vdwg.mxu0
        %v962 = vsel %vm499, %v657, 0
        %964 = vmatprep.subr.mxu0 0.0
        %965 = vmatpush1.msra.mxu0 %v612
        %966 = vmatprep.subr.mxu0 0.0
        %967 = vmatpush1.msra.mxu0 %v613
        %968 = vmatprep.subr.mxu0 0.0
        %969 = vmatpush1.msra.mxu0 0.0
        %970 = vmatprep.subr.mxu0 0.0
        %971 = vmatpush1.msra.mxu0 0.0
        %972 = vmatprep.subr.mxu0 0.0
        %973 = vmatpush1.msra.mxu0 0.0
        %974 = vmatprep.subr.mxu0 0.0
        %975 = vmatpush1.msra.mxu0 0.0
        %976 = vmatprep.subr.mxu0 0.0
        %977 = vmatpush1.msra.mxu0 0.0
        %978 = vmatprep.subr.mxu0 0.0
        %979 = vmatpush1.msra.mxu0 0.0
        %980 = vmatprep.subr.mxu0 0.0
        %981 = vmatpush1.msra.mxu0 0.0
        %982 = vmatprep.subr.mxu0 0.0
        %983 = vmatpush1.msra.mxu0 0.0
        %984 = vmatprep.subr.mxu0 0.0
        %985 = vmatpush1.msra.mxu0 0.0
        %986 = vmatprep.subr.mxu0 0.0
        %987 = vmatpush1.msra.mxu0 0.0
        %988 = vmatprep.subr.mxu0 0.0
        %989 = vmatpush1.msra.mxu0 0.0
        %990 = vmatprep.subr.mxu0 0.0
        %991 = vmatpush1.msra.mxu0 0.0
        %992 = vmatprep.subr.mxu0 0.0
        %993 = vmatpush1.msra.mxu0 0.0
        %994 = vmatprep.subr.mxu0 0.0
        %995 = vmatpush1.msra.mxu0 0.0
        %996 = vmatprep.subr.mxu0 0.0
        %997 = vmatpush1.msra.mxu0 0.0
        %998 = vmatprep.subr.mxu0 0.0
        %999 = vmatpush1.msra.mxu0 0.0
        %1000 = vmatprep.subr.mxu0 0.0
        %1001 = vmatpush1.msra.mxu0 0.0
        %1002 = vmatprep.subr.mxu0 0.0
        %1003 = vmatpush1.msra.mxu0 0.0
        %1004 = vmatprep.subr.mxu0 0.0
        %1005 = vmatpush1.msra.mxu0 0.0
        %1006 = vmatprep.subr.mxu0 0.0
        %1007 = vmatpush1.msra.mxu0 0.0
        %1008 = vmatprep.subr.mxu0 0.0
        %1009 = vmatpush1.msra.mxu0 0.0
        %1010 = vmatprep.subr.mxu0 0.0
        %1011 = vmatpush1.msra.mxu0 0.0
        %1012 = vmatprep.subr.mxu0 0.0
        %1013 = vmatpush1.msra.mxu0 0.0
        %1014 = vmatprep.subr.mxu0 0.0
        %1015 = vmatpush1.msra.mxu0 0.0
        %1016 = vmatprep.subr.mxu0 0.0
        %1017 = vmatpush1.msra.mxu0 0.0
        %1018 = vmatprep.subr.mxu0 0.0
        %1019 = vmatpush1.msra.mxu0 0.0
        %1020 = vmatprep.subr.mxu0 0.0
        %1021 = vmatpush1.msra.mxu0 0.0
        %1022 = vmatprep.subr.mxu0 0.0
        %1023 = vmatpush1.msra.mxu0 0.0
        %1024 = vmatprep.subr.mxu0 0.0
        %1025 = vmatpush1.msra.mxu0 0.0
        %1026 = vmatprep.subr.mxu0 0.0
        %1027 = vmatpush1.msra.mxu0 0.0
        %1028 = vmatprep.mubr.f32.mxu0 0.0
        %1029 = vmatmul.mubr.f32.gmra.mrb[0].mxu0 %v962
        %v1030 = vpop.f32.mrb[0].mxu0
        %v1031 = vadd.f32 0.0, %v1030
        %v1032 = vpop.f32.mrb[0].mxu0
        %1033 = vdwg.mxu0
        %v1035 = vsel %vm499, %v667, 0
        %1037 = vmatprep.subr.mxu0 0.0
        %1038 = vmatpush1.msra.mxu0 %v614
        %1039 = vmatprep.subr.mxu0 0.0
        %1040 = vmatpush1.msra.mxu0 %v615
        %1041 = vmatprep.subr.mxu0 0.0
        %1042 = vmatpush1.msra.mxu0 0.0
        %1043 = vmatprep.subr.mxu0 0.0
        %1044 = vmatpush1.msra.mxu0 0.0
        %1045 = vmatprep.subr.mxu0 0.0
        %1046 = vmatpush1.msra.mxu0 0.0
        %1047 = vmatprep.subr.mxu0 0.0
        %1048 = vmatpush1.msra.mxu0 0.0
        %1049 = vmatprep.subr.mxu0 0.0
        %1050 = vmatpush1.msra.mxu0 0.0
        %1051 = vmatprep.subr.mxu0 0.0
        %1052 = vmatpush1.msra.mxu0 0.0
        %1053 = vmatprep.subr.mxu0 0.0
        %1054 = vmatpush1.msra.mxu0 0.0
        %1055 = vmatprep.subr.mxu0 0.0
        %1056 = vmatpush1.msra.mxu0 0.0
        %1057 = vmatprep.subr.mxu0 0.0
        %1058 = vmatpush1.msra.mxu0 0.0
        %1059 = vmatprep.subr.mxu0 0.0
        %1060 = vmatpush1.msra.mxu0 0.0
        %1061 = vmatprep.subr.mxu0 0.0
        %1062 = vmatpush1.msra.mxu0 0.0
        %1063 = vmatprep.subr.mxu0 0.0
        %1064 = vmatpush1.msra.mxu0 0.0
        %1065 = vmatprep.subr.mxu0 0.0
        %1066 = vmatpush1.msra.mxu0 0.0
        %1067 = vmatprep.subr.mxu0 0.0
        %1068 = vmatpush1.msra.mxu0 0.0
        %1069 = vmatprep.subr.mxu0 0.0
        %1070 = vmatpush1.msra.mxu0 0.0
        %1071 = vmatprep.subr.mxu0 0.0
        %1072 = vmatpush1.msra.mxu0 0.0
        %1073 = vmatprep.subr.mxu0 0.0
        %1074 = vmatpush1.msra.mxu0 0.0
        %1075 = vmatprep.subr.mxu0 0.0
        %1076 = vmatpush1.msra.mxu0 0.0
        %1077 = vmatprep.subr.mxu0 0.0
        %1078 = vmatpush1.msra.mxu0 0.0
        %1079 = vmatprep.subr.mxu0 0.0
        %1080 = vmatpush1.msra.mxu0 0.0
        %1081 = vmatprep.subr.mxu0 0.0
        %1082 = vmatpush1.msra.mxu0 0.0
        %1083 = vmatprep.subr.mxu0 0.0
        %1084 = vmatpush1.msra.mxu0 0.0
        %1085 = vmatprep.subr.mxu0 0.0
        %1086 = vmatpush1.msra.mxu0 0.0
        %1087 = vmatprep.subr.mxu0 0.0
        %1088 = vmatpush1.msra.mxu0 0.0
        %1089 = vmatprep.subr.mxu0 0.0
        %1090 = vmatpush1.msra.mxu0 0.0
        %1091 = vmatprep.subr.mxu0 0.0
        %1092 = vmatpush1.msra.mxu0 0.0
        %1093 = vmatprep.subr.mxu0 0.0
        %1094 = vmatpush1.msra.mxu0 0.0
        %1095 = vmatprep.subr.mxu0 0.0
        %1096 = vmatpush1.msra.mxu0 0.0
        %1097 = vmatprep.subr.mxu0 0.0
        %1098 = vmatpush1.msra.mxu0 0.0
        %1099 = vmatprep.subr.mxu0 0.0
        %1100 = vmatpush1.msra.mxu0 0.0
        %1101 = vmatprep.mubr.f32.mxu0 0.0
        %1102 = vmatmul.mubr.f32.gmra.mrb[0].mxu0 %v1035
        %v1103 = vpop.f32.mrb[0].mxu0
        %v1104 = vadd.f32 0.0, %v1103
        %v1105 = vpop.f32.mrb[0].mxu0
        %1106 = vdwg.mxu0
        %v1108 = vsel %vm499, %v664, 0
        %1110 = vmatprep.subr.mxu0 0.0
        %1111 = vmatpush1.msra.mxu0 %v616
        %1112 = vmatprep.subr.mxu0 0.0
        %1113 = vmatpush1.msra.mxu0 %v617
        %1114 = vmatprep.subr.mxu0 0.0
        %1115 = vmatpush1.msra.mxu0 0.0
        %1116 = vmatprep.subr.mxu0 0.0
        %1117 = vmatpush1.msra.mxu0 0.0
        %1118 = vmatprep.subr.mxu0 0.0
        %1119 = vmatpush1.msra.mxu0 0.0
        %1120 = vmatprep.subr.mxu0 0.0
        %1121 = vmatpush1.msra.mxu0 0.0
        %1122 = vmatprep.subr.mxu0 0.0
        %1123 = vmatpush1.msra.mxu0 0.0
        %1124 = vmatprep.subr.mxu0 0.0
        %1125 = vmatpush1.msra.mxu0 0.0
        %1126 = vmatprep.subr.mxu0 0.0
        %1127 = vmatpush1.msra.mxu0 0.0
        %1128 = vmatprep.subr.mxu0 0.0
        %1129 = vmatpush1.msra.mxu0 0.0
        %1130 = vmatprep.subr.mxu0 0.0
        %1131 = vmatpush1.msra.mxu0 0.0
        %1132 = vmatprep.subr.mxu0 0.0
        %1133 = vmatpush1.msra.mxu0 0.0
        %1134 = vmatprep.subr.mxu0 0.0
        %1135 = vmatpush1.msra.mxu0 0.0
        %1136 = vmatprep.subr.mxu0 0.0
        %1137 = vmatpush1.msra.mxu0 0.0
        %1138 = vmatprep.subr.mxu0 0.0
        %1139 = vmatpush1.msra.mxu0 0.0
        %1140 = vmatprep.subr.mxu0 0.0
        %1141 = vmatpush1.msra.mxu0 0.0
        %1142 = vmatprep.subr.mxu0 0.0
        %1143 = vmatpush1.msra.mxu0 0.0
        %1144 = vmatprep.subr.mxu0 0.0
        %1145 = vmatpush1.msra.mxu0 0.0
        %1146 = vmatprep.subr.mxu0 0.0
        %1147 = vmatpush1.msra.mxu0 0.0
        %1148 = vmatprep.subr.mxu0 0.0
        %1149 = vmatpush1.msra.mxu0 0.0
        %1150 = vmatprep.subr.mxu0 0.0
        %1151 = vmatpush1.msra.mxu0 0.0
        %1152 = vmatprep.subr.mxu0 0.0
        %1153 = vmatpush1.msra.mxu0 0.0
        %1154 = vmatprep.subr.mxu0 0.0
        %1155 = vmatpush1.msra.mxu0 0.0
        %1156 = vmatprep.subr.mxu0 0.0
        %1157 = vmatpush1.msra.mxu0 0.0
        %1158 = vmatprep.subr.mxu0 0.0
        %1159 = vmatpush1.msra.mxu0 0.0
        %1160 = vmatprep.subr.mxu0 0.0
        %1161 = vmatpush1.msra.mxu0 0.0
        %1162 = vmatprep.subr.mxu0 0.0
        %1163 = vmatpush1.msra.mxu0 0.0
        %1164 = vmatprep.subr.mxu0 0.0
        %1165 = vmatpush1.msra.mxu0 0.0
        %1166 = vmatprep.subr.mxu0 0.0
        %1167 = vmatpush1.msra.mxu0 0.0
        %1168 = vmatprep.subr.mxu0 0.0
        %1169 = vmatpush1.msra.mxu0 0.0
        %1170 = vmatprep.subr.mxu0 0.0
        %1171 = vmatpush1.msra.mxu0 0.0
        %1172 = vmatprep.subr.mxu0 0.0
        %1173 = vmatpush1.msra.mxu0 0.0
        %1174 = vmatprep.mubr.f32.mxu0 0.0
        %1175 = vmatmul.mubr.f32.gmra.mrb[0].mxu0 %v1108
        %v1176 = vpop.f32.mrb[0].mxu0
        %v1177 = vadd.f32 0.0, %v1176
        %v1178 = vpop.f32.mrb[0].mxu0
        %1179 = vdwg.mxu0
        %v1181 = vsel %vm499, %v668, 0
        %1183 = vmatprep.subr.mxu0 0.0
        %1184 = vmatpush1.msra.mxu0 %v618
        %1185 = vmatprep.subr.mxu0 0.0
        %1186 = vmatpush1.msra.mxu0 %v619
        %1187 = vmatprep.subr.mxu0 0.0
        %1188 = vmatpush1.msra.mxu0 0.0
        %1189 = vmatprep.subr.mxu0 0.0
        %1190 = vmatpush1.msra.mxu0 0.0
        %1191 = vmatprep.subr.mxu0 0.0
        %1192 = vmatpush1.msra.mxu0 0.0
        %1193 = vmatprep.subr.mxu0 0.0
        %1194 = vmatpush1.msra.mxu0 0.0
        %1195 = vmatprep.subr.mxu0 0.0
        %1196 = vmatpush1.msra.mxu0 0.0
        %1197 = vmatprep.subr.mxu0 0.0
        %1198 = vmatpush1.msra.mxu0 0.0
        %1199 = vmatprep.subr.mxu0 0.0
        %1200 = vmatpush1.msra.mxu0 0.0
        %1201 = vmatprep.subr.mxu0 0.0
        %1202 = vmatpush1.msra.mxu0 0.0
        %1203 = vmatprep.subr.mxu0 0.0
        %1204 = vmatpush1.msra.mxu0 0.0
        %1205 = vmatprep.subr.mxu0 0.0
        %1206 = vmatpush1.msra.mxu0 0.0
        %1207 = vmatprep.subr.mxu0 0.0
        %1208 = vmatpush1.msra.mxu0 0.0
        %1209 = vmatprep.subr.mxu0 0.0
        %1210 = vmatpush1.msra.mxu0 0.0
        %1211 = vmatprep.subr.mxu0 0.0
        %1212 = vmatpush1.msra.mxu0 0.0
        %1213 = vmatprep.subr.mxu0 0.0
        %1214 = vmatpush1.msra.mxu0 0.0
        %1215 = vmatprep.subr.mxu0 0.0
        %1216 = vmatpush1.msra.mxu0 0.0
        %1217 = vmatprep.subr.mxu0 0.0
        %1218 = vmatpush1.msra.mxu0 0.0
        %1219 = vmatprep.subr.mxu0 0.0
        %1220 = vmatpush1.msra.mxu0 0.0
        %1221 = vmatprep.subr.mxu0 0.0
        %1222 = vmatpush1.msra.mxu0 0.0
        %1223 = vmatprep.subr.mxu0 0.0
        %1224 = vmatpush1.msra.mxu0 0.0
        %1225 = vmatprep.subr.mxu0 0.0
        %1226 = vmatpush1.msra.mxu0 0.0
        %1227 = vmatprep.subr.mxu0 0.0
        %1228 = vmatpush1.msra.mxu0 0.0
        %1229 = vmatprep.subr.mxu0 0.0
        %1230 = vmatpush1.msra.mxu0 0.0
        %1231 = vmatprep.subr.mxu0 0.0
        %1232 = vmatpush1.msra.mxu0 0.0
        %1233 = vmatprep.subr.mxu0 0.0
        %1234 = vmatpush1.msra.mxu0 0.0
        %1235 = vmatprep.subr.mxu0 0.0
        %1236 = vmatpush1.msra.mxu0 0.0
        %1237 = vmatprep.subr.mxu0 0.0
        %1238 = vmatpush1.msra.mxu0 0.0
        %1239 = vmatprep.subr.mxu0 0.0
        %1240 = vmatpush1.msra.mxu0 0.0
        %1241 = vmatprep.subr.mxu0 0.0
        %1242 = vmatpush1.msra.mxu0 0.0
        %1243 = vmatprep.subr.mxu0 0.0
        %1244 = vmatpush1.msra.mxu0 0.0
        %1245 = vmatprep.subr.mxu0 0.0
        %1246 = vmatpush1.msra.mxu0 0.0
        %1247 = vmatprep.mubr.f32.mxu0 0.0
        %1248 = vmatmul.mubr.f32.gmra.mrb[0].mxu0 %v1181
        %v1249 = vpop.f32.mrb[0].mxu0
        %v1250 = vadd.f32 0.0, %v1249
        %v1251 = vpop.f32.mrb[0].mxu0
        %1252 = vdwg.mxu0
        %vm1253 = vcmask 253952
        %v1254 = vsel %vm1253, %v739, 0.0
        %v1255 = vsel %vm1253, %v812, 0.0
        %v1256 = vadd.f32 %v1254, %v1255
        %v1257 = vsel %vm1253, %v885, 0.0
        %v1258 = vadd.f32 %v1256, %v1257
        %v1259 = vsel %vm1253, %v958, 0.0
        %v1260 = vadd.f32 %v1258, %v1259
        %v1261 = vsel %vm1253, %v1031, 0.0
        %v1262 = vadd.f32 %v1260, %v1261
        %v1263 = vsel %vm1253, %v1104, 0.0
        %v1264 = vadd.f32 %v1262, %v1263
        %v1265 = vsel %vm1253, %v1177, 0.0
        %v1266 = vadd.f32 %v1264, %v1265
        %v1267 = vsel %vm1253, %v1250, 0.0
        %v1268 = vadd.f32 %v1266, %v1267
        %v1269 = vld [vmem:[%s7] sm:$0x1]
        %v1270 = vadd.f32 %v1268, %v1269
        %v1271 = vmax.f32 %v1270, 0.0
        %v1272 = vld [vmem:[%s6] sm:$0xff]
        %v1273 = vld [vmem:[%s6 + $0x8] sm:$0xff]
        %v1274 = vld [vmem:[%s6 + $0x10] sm:$0xff]
        %v1275 = vld [vmem:[%s6 + $0x18] sm:$0xff]
        %v1276 = vld [vmem:[%s8] sm:$0x1]
        %vm1277 = vcmask 261120
        %v1279 = vsel %vm1277, %v1271, 0
        %1281 = vmatprep.subr.mxu0 0.0
        %1282 = vmatpush1.msra.mxu0 %v1272
        %1283 = vmatprep.subr.mxu0 0.0
        %1284 = vmatpush1.msra.mxu0 %v1273
        %1285 = vmatprep.subr.mxu0 0.0
        %1286 = vmatpush1.msra.mxu0 %v1274
        %1287 = vmatprep.subr.mxu0 0.0
        %1288 = vmatpush1.msra.mxu0 %v1275
        %1289 = vmatprep.subr.mxu0 0.0
        %1290 = vmatpush1.msra.mxu0 0.0
        %1291 = vmatprep.subr.mxu0 0.0
        %1292 = vmatpush1.msra.mxu0 0.0
        %1293 = vmatprep.subr.mxu0 0.0
        %1294 = vmatpush1.msra.mxu0 0.0
        %1295 = vmatprep.subr.mxu0 0.0
        %1296 = vmatpush1.msra.mxu0 0.0
        %1297 = vmatprep.subr.mxu0 0.0
        %1298 = vmatpush1.msra.mxu0 0.0
        %1299 = vmatprep.subr.mxu0 0.0
        %1300 = vmatpush1.msra.mxu0 0.0
        %1301 = vmatprep.subr.mxu0 0.0
        %1302 = vmatpush1.msra.mxu0 0.0
        %1303 = vmatprep.subr.mxu0 0.0
        %1304 = vmatpush1.msra.mxu0 0.0
        %1305 = vmatprep.subr.mxu0 0.0
        %1306 = vmatpush1.msra.mxu0 0.0
        %1307 = vmatprep.subr.mxu0 0.0
        %1308 = vmatpush1.msra.mxu0 0.0
        %1309 = vmatprep.subr.mxu0 0.0
        %1310 = vmatpush1.msra.mxu0 0.0
        %1311 = vmatprep.subr.mxu0 0.0
        %1312 = vmatpush1.msra.mxu0 0.0
        %1313 = vmatprep.subr.mxu0 0.0
        %1314 = vmatpush1.msra.mxu0 0.0
        %1315 = vmatprep.subr.mxu0 0.0
        %1316 = vmatpush1.msra.mxu0 0.0
        %1317 = vmatprep.subr.mxu0 0.0
        %1318 = vmatpush1.msra.mxu0 0.0
        %1319 = vmatprep.subr.mxu0 0.0
        %1320 = vmatpush1.msra.mxu0 0.0
        %1321 = vmatprep.subr.mxu0 0.0
        %1322 = vmatpush1.msra.mxu0 0.0
        %1323 = vmatprep.subr.mxu0 0.0
        %1324 = vmatpush1.msra.mxu0 0.0
        %1325 = vmatprep.subr.mxu0 0.0
        %1326 = vmatpush1.msra.mxu0 0.0
        %1327 = vmatprep.subr.mxu0 0.0
        %1328 = vmatpush1.msra.mxu0 0.0
        %1329 = vmatprep.subr.mxu0 0.0
        %1330 = vmatpush1.msra.mxu0 0.0
        %1331 = vmatprep.subr.mxu0 0.0
        %1332 = vmatpush1.msra.mxu0 0.0
        %1333 = vmatprep.subr.mxu0 0.0
        %1334 = vmatpush1.msra.mxu0 0.0
        %1335 = vmatprep.subr.mxu0 0.0
        %1336 = vmatpush1.msra.mxu0 0.0
        %1337 = vmatprep.subr.mxu0 0.0
        %1338 = vmatpush1.msra.mxu0 0.0
        %1339 = vmatprep.subr.mxu0 0.0
        %1340 = vmatpush1.msra.mxu0 0.0
        %1341 = vmatprep.subr.mxu0 0.0
        %1342 = vmatpush1.msra.mxu0 0.0
        %1343 = vmatprep.subr.mxu0 0.0
        %1344 = vmatpush1.msra.mxu0 0.0
        %1345 = vmatprep.mubr.f32.mxu0 0.0
        %1346 = vmatmul.mubr.f32.gmra.mrb[0].mxu0 %v1279
        %v1347 = vpop.f32.mrb[0].mxu0
        %v1348 = vadd.f32 %v1276, %v1347
        %v1349 = vpop.f32.mrb[0].mxu0
        %1350 = vdwg.mxu0
        %vm1351 = vcmask 73728
        %1352 = vst.msk [vmem:[%s324] sm:$0x1] %vm1351, %v1348
        %s1353 = sand.u32 %s225, 1
        %s1354 = scalar_lea.sflag [#allocation3], %s1353
        %s1355 = sand.u32 %s225, 1
        %s1356 = scalar_lea.vmem [#allocation2], %s1355
        // Predicated region
        $region57: #{tpu_custom_call.1} parent=55 // pred_check
          %p1357 = pneg %p235
        $region58: #{tpu_custom_call.1} parent=55 // pred_check_branch
          %1359 = sbr.rel (%p1357) target = $region60
        $region59: #{tpu_custom_call.1} parent=55 // pred_region
          %s1361 = ssub.s32 16, 16
          %1362 = vsyncadd %s1354, %s1361
          %s1363 = smul.addr %s23, 16
          %s1364 = scalar_lea.hbm %s9, %s1363
          %s1366 = sshll.u32 %s1356, 4
          %s1367 = int_to_ptr.vmem [resolvable:$true] %s1366
          %1369 = dma.vmem_to_hbm [thread:$0]  %s1367, 16, %s1364, %s1354
        $region60: #{tpu_custom_call.1} parent=55 // pred_fallthru
          _
      $region56: #{tpu_custom_call.1} parent=5 // pred_fallthru
        _
      %p1370 = scmp.le.s32.totalorder 2, %s18
      // Predicated region
      $region61: #{tpu_custom_call.1} parent=5 // pred_check
        %p1371 = pneg %p1370
      $region62: #{tpu_custom_call.1} parent=5 // pred_check_branch
        %1373 = sbr.rel (%p1371) target = $region64
      $region63: #{tpu_custom_call.1} parent=5 // pred_region
        %s1374 = ssub.s32 %s18, 2
        // Predicated region
        $region65: #{tpu_custom_call.1} parent=63 // pred_check
          %p1375 = pneg %p241
        $region66: #{tpu_custom_call.1} parent=63 // pred_check_branch
          %1377 = sbr.rel (%p1375) target = $region68
        $region67: #{tpu_custom_call.1} parent=63 // pred_region
          %s1378 = sand.u32 %s226, 1
          %s1379 = scalar_lea.sflag [#allocation3], %s1378
          %s1380 = sand.u32 %s226, 1
          %s1381 = scalar_lea.vmem [#allocation2], %s1380
          %1382 = dma.done %s1379, 16
        $region68: #{tpu_custom_call.1} parent=63 // pred_fallthru
          _
      $region64: #{tpu_custom_call.1} parent=5 // pred_fallthru
        _
    $region6: #{tpu_custom_call.1} parent=1 // loop_footer
      %s22 = sadd.s32 1, %s18
    $region7: #{tpu_custom_call.1} parent=1 // loop_footer_branch
      %17 = sbr.rel target = $region3
    $region8: #{tpu_custom_call.1} parent=1 // loop_exit
      _
    %1383 = vsyncpa [#allocation3], 1
    %s1384 = scalar_lea.sflag [#allocation3], 1
    %1385 = vsyncpa %s1384, 1

</llo_original>
